<compile_context>
chip_gen: v5e
topology: v5e:2x2
jax: 0.10.0
libtpu: 0.0.40
codegen_flags: <defaults>
</compile_context>

<pallas_src>
import functools
import math

import jax
import jax.numpy as jnp
from jax.experimental import pallas as pl
from jax.experimental.pallas import tpu as pltpu


# ---------------------------------------------------------------------------
# Schedule buffers (noise_schedule == 1: linear betas), plain-JAX glue.
# ---------------------------------------------------------------------------
def linear_schedule(beta_1, beta_T, T):
    betas = jnp.linspace(beta_1, beta_T, T).astype(jnp.float32)
    alphas = 1.0 - betas
    alphas_bar = jnp.cumprod(alphas)
    sqrt_alphas_bar = jnp.sqrt(alphas_bar)
    sqrt_one_minus_alphas_bar = jnp.sqrt(1.0 - alphas_bar)
    snr = -10.0 * jnp.log10((1.0 - alphas_bar) / alphas_bar)
    return sqrt_alphas_bar, sqrt_one_minus_alphas_bar, snr


# ---------------------------------------------------------------------------
# Pallas kernel: the entire reverse-diffusion loop in one shot (no grid).
#   x_ref   (BP, FP)  initial x_t (equalized, real/imag-concatenated, padded)
#   g_ref   (BP, FP)  hoisted Rayleigh gain |h| / (|h|^2 + sigma^2)
#   hb_ref  (BP, H)   hoisted h-projection  h @ w1h + b1
#   tp_ref  (t,  H)   hoisted timestep-embedding projections temb @ w1t
#   w1x_ref (FP, H), w2_ref (H, FP), b2_ref (1, FP)
#   ca_ref / cb_ref (t,)  per-step x-update coefficients (SMEM)
#   out_ref (BP, FP)
# ---------------------------------------------------------------------------
def sampler_kernel(x_ref, g_ref, hb_ref, tp_ref, w1x_ref, w2_ref, b2_ref,
                   ca_ref, cb_ref, out_ref, *, t_steps):
    x = x_ref[...]
    g = g_ref[...]
    hb = hb_ref[...]
    w1x = w1x_ref[...]
    w2 = w2_ref[...]
    b2 = b2_ref[...]

    # t_steps <= T (20) and static -> fully unrolled; x_t is carried as a value.
    for i in range(t_steps):
        te = tp_ref[pl.ds(i, 1), :]                      # (1, H), static row
        hid = (jnp.dot(x, w1x, preferred_element_type=jnp.float32)
               + hb + te)
        hid = jax.nn.gelu(hid)
        eps = (jnp.dot(hid, w2, preferred_element_type=jnp.float32) + b2) * g
        # x_new = a * x_t + b * eps  (covers time_step>0 and time_step==0 forms)
        x = ca_ref[i] * x + cb_ref[i] * eps

    out_ref[...] = x


def run_sampler_pallas(x0, h_feat, temb, params, coef_a, coef_b, sigma_sq):
    B, F = x0.shape
    t_steps, _ = temb.shape
    H = params["w2"].shape[0]

    # Pad to sublane/lane-dense shapes: B -> multiple of 8, F -> multiple of 128.
    BP = ((B + 7) // 8) * 8
    FP = ((F + 127) // 128) * 128

    x0_p = jnp.zeros((BP, FP), jnp.float32).at[:B, :F].set(x0)
    h_p = jnp.zeros((BP, FP), jnp.float32).at[:B, :F].set(h_feat)
    w1x_p = jnp.zeros((FP, H), jnp.float32).at[:F, :].set(params["w1x"])
    w1h_p = jnp.zeros((FP, H), jnp.float32).at[:F, :].set(params["w1h"])
    w2_p = jnp.zeros((H, FP), jnp.float32).at[:, :F].set(params["w2"])
    b2_p = jnp.zeros((1, FP), jnp.float32).at[:, :F].set(params["b2"])

    # Hoisted loop invariants (computed once, outside the diffusion loop).
    hb = jnp.dot(h_p, w1h_p, preferred_element_type=jnp.float32) + params["b1"]
    tp = jnp.dot(temb, params["w1t"], preferred_element_type=jnp.float32)
    gain = h_p / (h_p * h_p + sigma_sq)   # padded entries: 0/(0+s2) = 0, no NaN

    kernel = functools.partial(sampler_kernel, t_steps=t_steps)
    out_p = pl.pallas_call(
        kernel,
        out_shape=jax.ShapeDtypeStruct((BP, FP), jnp.float32),
        in_specs=[
            pl.BlockSpec(memory_space=pltpu.MemorySpace.VMEM),  # x0
            pl.BlockSpec(memory_space=pltpu.MemorySpace.VMEM),  # gain
            pl.BlockSpec(memory_space=pltpu.MemorySpace.VMEM),  # hb
            pl.BlockSpec(memory_space=pltpu.MemorySpace.VMEM),  # tp
            pl.BlockSpec(memory_space=pltpu.MemorySpace.VMEM),  # w1x
            pl.BlockSpec(memory_space=pltpu.MemorySpace.VMEM),  # w2
            pl.BlockSpec(memory_space=pltpu.MemorySpace.VMEM),  # b2
            pl.BlockSpec(memory_space=pltpu.MemorySpace.SMEM),  # coef_a
            pl.BlockSpec(memory_space=pltpu.MemorySpace.SMEM),  # coef_b
        ],
        out_specs=pl.BlockSpec(memory_space=pltpu.MemorySpace.VMEM),
    )(x0_p, gain, hb, tp, w1x_p, w2_p, b2_p,
      coef_a.astype(jnp.float32), coef_b.astype(jnp.float32))

    return out_p[:B, :F]


# ---------------------------------------------------------------------------
# Pure-JAX reference (original un-hoisted, un-padded math) for a sanity check.
# ---------------------------------------------------------------------------
def run_sampler_ref(x0, h_feat, temb, params, coef_a, coef_b, sigma_sq):
    x = x0
    gain = h_feat / (h_feat * h_feat + sigma_sq)
    for i in range(temb.shape[0]):
        te = temb[i:i + 1]
        hid = (jnp.dot(x, params["w1x"], preferred_element_type=jnp.float32)
               + jnp.dot(h_feat, params["w1h"], preferred_element_type=jnp.float32)
               + jnp.dot(te, params["w1t"], preferred_element_type=jnp.float32)
               + params["b1"])
        hid = jax.nn.gelu(hid)
        eps = jnp.dot(hid, params["w2"], preferred_element_type=jnp.float32) + params["b2"]
        eps = eps * gain
        x = coef_a[i] * x + coef_b[i] * eps
    return x


if __name__ == "__main__":
    # --- module config (noise_schedule=1, linear betas) ---
    T = 20
    beta_1, beta_T = 1e-4, 0.02
    t_max = 0.0
    snr = 10.0
    snr_train = 10.0
    channel_type = "rayleigh"

    # --- small shapes: B=2 batch, C=4 channels, L=8 complex sequence ---
    B, C, L = 2, 4, 8
    F = C * 2 * L          # flattened real feature dim
    D_TEMB, HID = 32, 128  # synthetic denoiser sizes

    key = jax.random.PRNGKey(0)
    k_xr, k_xi, k_hr, k_hi, k1, k2, k3, k4 = jax.random.split(key, 8)
    x_hat = (jax.random.normal(k_xr, (B, C, L))
             + 1j * jax.random.normal(k_xi, (B, C, L))).astype(jnp.complex64)
    h = (jax.random.normal(k_hr, (B, C, L))
         + 1j * jax.random.normal(k_hi, (B, C, L))).astype(jnp.complex64)

    # --- registered buffers ---
    sab, somab, snr_buf = linear_schedule(beta_1, beta_T, T)

    # --- t selection: snr = max(snr, t_max); t = argmin|snr_buf - snr| + 1 ---
    snr_eff = max(snr, t_max)
    t = int(jnp.argmin(jnp.abs(snr_buf - snr_eff))) + 1

    sigma_sq = 1.0 / (10.0 ** (snr_train / 10.0))

    # --- rayleigh MMSE equalization + real/imag split (complex glue in JAX) ---
    x_eq = x_hat * jnp.conj(h) / (jnp.abs(h) ** 2 + sigma_sq)
    x_t0 = jnp.concatenate([jnp.real(x_eq), jnp.imag(x_eq)], axis=2)  # [B, C, 2L]
    h_abs = jnp.abs(h)
    h_cat = jnp.concatenate([h_abs, h_abs], axis=2)                   # [B, C, 2L]

    x0_flat = x_t0.reshape(B, F).astype(jnp.float32)
    h_flat = h_cat.reshape(B, F).astype(jnp.float32)

    # --- per-step coefficients: x_new = a*x + b*eps, visiting ts = t-1..0 ---
    ts = jnp.arange(t - 1, -1, -1)
    ts_prev = jnp.maximum(ts - 1, 0)          # avoid negative-index wraparound
    a_mid = sab[ts_prev] / sab[ts]
    b_mid = somab[ts_prev] - a_mid * somab[ts]
    a_last = 1.0 / sab[0]
    b_last = -somab[0] / sab[0]
    coef_a = jnp.where(ts > 0, a_mid, a_last).astype(jnp.float32)
    coef_b = jnp.where(ts > 0, b_mid, b_last).astype(jnp.float32)

    # --- sinusoidal timestep embeddings in visit order ---
    half = D_TEMB // 2
    freqs = jnp.exp(-math.log(10000.0) * jnp.arange(half) / half)
    args = ts[:, None].astype(jnp.float32) * freqs[None, :].astype(jnp.float32)
    temb = jnp.concatenate([jnp.sin(args), jnp.cos(args)], axis=-1).astype(jnp.float32)

    # --- deterministic synthetic denoiser weights ---
    # TODO(synk): self.model is an external nn.Module (unspecified here); a fixed
    # 2-layer MLP conditioned on (x_t, t, h) stands in with deterministic weights.
    def init(k, shape, scale=0.05):
        return (scale * jax.random.normal(k, shape)).astype(jnp.float32)

    params = {
        "w1x": init(k1, (F, HID)),
        "w1h": init(k2, (F, HID)),
        "w1t": init(k3, (D_TEMB, HID)),
        "b1": jnp.zeros((1, HID), jnp.float32),
        "w2": init(k4, (HID, F)),
        "b2": jnp.zeros((1, F), jnp.float32),
    }

    x_0 = run_sampler_pallas(x0_flat, h_flat, temb, params, coef_a, coef_b, sigma_sq)
    x_0 = jax.block_until_ready(x_0)
    x_0_nc2l = x_0.reshape(B, C, 2 * L)  # back to the PyTorch output layout [B, C, 2L]

    ref = run_sampler_ref(x0_flat, h_flat, temb, params, coef_a, coef_b, sigma_sq)

    assert int(jnp.isnan(x_0).sum()) == 0, "nan in tensor."
    assert jnp.allclose(x_0, ref, rtol=1e-2, atol=1e-2), float(jnp.max(jnp.abs(x_0 - ref)))

    print("KERNEL_OK")
</pallas_src>

<mosaic_0001>
module attributes {stable_mosaic.version = 11 : i64} {
  func.func @sampler_kernel(%arg0: memref<8x128xf32, #tpu.memory_space<vmem>>, %arg1: memref<8x128xf32, #tpu.memory_space<vmem>>, %arg2: memref<8x128xf32, #tpu.memory_space<vmem>>, %arg3: memref<14x128xf32, #tpu.memory_space<vmem>>, %arg4: memref<128x128xf32, #tpu.memory_space<vmem>>, %arg5: memref<128x128xf32, #tpu.memory_space<vmem>>, %arg6: memref<1x128xf32, #tpu.memory_space<vmem>>, %arg7: memref<14xf32, #tpu.memory_space<smem>>, %arg8: memref<14xf32, #tpu.memory_space<smem>>, %arg9: memref<8x128xf32, #tpu.memory_space<vmem>>) attributes {dimension_semantics = [], scalar_prefetch = 0 : i64, scratch_operands = 0 : i64, tpu.core_type = #tpu.core_type<tc>} {
    %c0 = arith.constant 0 : index
    %c0_0 = arith.constant 0 : index
    %0 = vector.load %arg0[%c0, %c0_0] : memref<8x128xf32, #tpu.memory_space<vmem>>, vector<8x128xf32>
    %c0_1 = arith.constant 0 : index
    %c0_2 = arith.constant 0 : index
    %1 = vector.load %arg1[%c0_1, %c0_2] : memref<8x128xf32, #tpu.memory_space<vmem>>, vector<8x128xf32>
    %c0_3 = arith.constant 0 : index
    %c0_4 = arith.constant 0 : index
    %2 = vector.load %arg2[%c0_3, %c0_4] : memref<8x128xf32, #tpu.memory_space<vmem>>, vector<8x128xf32>
    %c0_5 = arith.constant 0 : index
    %c0_6 = arith.constant 0 : index
    %3 = vector.load %arg4[%c0_5, %c0_6] : memref<128x128xf32, #tpu.memory_space<vmem>>, vector<128x128xf32>
    %c0_7 = arith.constant 0 : index
    %c0_8 = arith.constant 0 : index
    %4 = vector.load %arg5[%c0_7, %c0_8] : memref<128x128xf32, #tpu.memory_space<vmem>>, vector<128x128xf32>
    %c0_9 = arith.constant 0 : index
    %c0_10 = arith.constant 0 : index
    %5 = vector.load %arg6[%c0_9, %c0_10] : memref<1x128xf32, #tpu.memory_space<vmem>>, vector<1x128xf32>
    %c0_11 = arith.constant 0 : index
    %c0_12 = arith.constant 0 : index
    %6 = vector.load %arg3[%c0_11, %c0_12] : memref<14x128xf32, #tpu.memory_space<vmem>>, vector<1x128xf32>
    %cst = arith.constant dense<0.000000e+00> : vector<8x128xf32>
    %7 = tpu.matmul %0, %3, %cst {dimension_numbers = #tpu.dot_dimension_numbers<[1], [0], [0], [1], [0, 0, 1, 1], [], []>} : vector<8x128xf32>, vector<128x128xf32>, vector<8x128xf32> -> vector<8x128xf32>
    %8 = arith.addf %7, %2 : vector<8x128xf32>
    %9 = vector.broadcast %6 : vector<1x128xf32> to vector<8x128xf32>
    %10 = arith.addf %8, %9 : vector<8x128xf32>
    %11 = arith.mulf %10, %10 : vector<8x128xf32>
    %12 = arith.mulf %10, %11 : vector<8x128xf32>
    %cst_13 = arith.constant 4.471500e-02 : f32
    %13 = vector.broadcast %cst_13 : f32 to vector<8x128xf32>
    %14 = arith.mulf %13, %12 : vector<8x128xf32>
    %15 = arith.addf %10, %14 : vector<8x128xf32>
    %cst_14 = arith.constant 0.797884583 : f32
    %16 = vector.broadcast %cst_14 : f32 to vector<8x128xf32>
    %17 = arith.mulf %16, %15 : vector<8x128xf32>
    %18 = math.tanh %17 : vector<8x128xf32>
    %cst_15 = arith.constant 1.000000e+00 : f32
    %19 = vector.broadcast %cst_15 : f32 to vector<8x128xf32>
    %20 = arith.addf %19, %18 : vector<8x128xf32>
    %cst_16 = arith.constant 5.000000e-01 : f32
    %21 = vector.broadcast %cst_16 : f32 to vector<8x128xf32>
    %22 = arith.mulf %21, %20 : vector<8x128xf32>
    %23 = arith.mulf %10, %22 : vector<8x128xf32>
    %cst_17 = arith.constant dense<0.000000e+00> : vector<8x128xf32>
    %24 = tpu.matmul %23, %4, %cst_17 {dimension_numbers = #tpu.dot_dimension_numbers<[1], [0], [0], [1], [0, 0, 1, 1], [], []>} : vector<8x128xf32>, vector<128x128xf32>, vector<8x128xf32> -> vector<8x128xf32>
    %25 = vector.broadcast %5 : vector<1x128xf32> to vector<8x128xf32>
    %26 = arith.addf %24, %25 : vector<8x128xf32>
    %27 = arith.mulf %26, %1 : vector<8x128xf32>
    %c0_18 = arith.constant 0 : index
    %28 = memref.load %arg7[%c0_18] : memref<14xf32, #tpu.memory_space<smem>>
    %29 = vector.broadcast %28 : f32 to vector<8x128xf32>
    %30 = arith.mulf %29, %0 : vector<8x128xf32>
    %c0_19 = arith.constant 0 : index
    %31 = memref.load %arg8[%c0_19] : memref<14xf32, #tpu.memory_space<smem>>
    %32 = vector.broadcast %31 : f32 to vector<8x128xf32>
    %33 = arith.mulf %32, %27 : vector<8x128xf32>
    %34 = arith.addf %30, %33 : vector<8x128xf32>
    %c1 = arith.constant 1 : index
    %c0_20 = arith.constant 0 : index
    %35 = vector.load %arg3[%c1, %c0_20] : memref<14x128xf32, #tpu.memory_space<vmem>>, vector<1x128xf32>
    %cst_21 = arith.constant dense<0.000000e+00> : vector<8x128xf32>
    %36 = tpu.matmul %34, %3, %cst_21 {dimension_numbers = #tpu.dot_dimension_numbers<[1], [0], [0], [1], [0, 0, 1, 1], [], []>} : vector<8x128xf32>, vector<128x128xf32>, vector<8x128xf32> -> vector<8x128xf32>
    %37 = arith.addf %36, %2 : vector<8x128xf32>
    %38 = vector.broadcast %35 : vector<1x128xf32> to vector<8x128xf32>
    %39 = arith.addf %37, %38 : vector<8x128xf32>
    %40 = arith.mulf %39, %39 : vector<8x128xf32>
    %41 = arith.mulf %39, %40 : vector<8x128xf32>
    %cst_22 = arith.constant 4.471500e-02 : f32
    %42 = vector.broadcast %cst_22 : f32 to vector<8x128xf32>
    %43 = arith.mulf %42, %41 : vector<8x128xf32>
    %44 = arith.addf %39, %43 : vector<8x128xf32>
    %cst_23 = arith.constant 0.797884583 : f32
    %45 = vector.broadcast %cst_23 : f32 to vector<8x128xf32>
    %46 = arith.mulf %45, %44 : vector<8x128xf32>
    %47 = math.tanh %46 : vector<8x128xf32>
    %cst_24 = arith.constant 1.000000e+00 : f32
    %48 = vector.broadcast %cst_24 : f32 to vector<8x128xf32>
    %49 = arith.addf %48, %47 : vector<8x128xf32>
    %cst_25 = arith.constant 5.000000e-01 : f32
    %50 = vector.broadcast %cst_25 : f32 to vector<8x128xf32>
    %51 = arith.mulf %50, %49 : vector<8x128xf32>
    %52 = arith.mulf %39, %51 : vector<8x128xf32>
    %cst_26 = arith.constant dense<0.000000e+00> : vector<8x128xf32>
    %53 = tpu.matmul %52, %4, %cst_26 {dimension_numbers = #tpu.dot_dimension_numbers<[1], [0], [0], [1], [0, 0, 1, 1], [], []>} : vector<8x128xf32>, vector<128x128xf32>, vector<8x128xf32> -> vector<8x128xf32>
    %54 = vector.broadcast %5 : vector<1x128xf32> to vector<8x128xf32>
    %55 = arith.addf %53, %54 : vector<8x128xf32>
    %56 = arith.mulf %55, %1 : vector<8x128xf32>
    %c1_27 = arith.constant 1 : index
    %57 = memref.load %arg7[%c1_27] : memref<14xf32, #tpu.memory_space<smem>>
    %58 = vector.broadcast %57 : f32 to vector<8x128xf32>
    %59 = arith.mulf %58, %34 : vector<8x128xf32>
    %c1_28 = arith.constant 1 : index
    %60 = memref.load %arg8[%c1_28] : memref<14xf32, #tpu.memory_space<smem>>
    %61 = vector.broadcast %60 : f32 to vector<8x128xf32>
    %62 = arith.mulf %61, %56 : vector<8x128xf32>
    %63 = arith.addf %59, %62 : vector<8x128xf32>
    %c2 = arith.constant 2 : index
    %c0_29 = arith.constant 0 : index
    %64 = vector.load %arg3[%c2, %c0_29] : memref<14x128xf32, #tpu.memory_space<vmem>>, vector<1x128xf32>
    %cst_30 = arith.constant dense<0.000000e+00> : vector<8x128xf32>
    %65 = tpu.matmul %63, %3, %cst_30 {dimension_numbers = #tpu.dot_dimension_numbers<[1], [0], [0], [1], [0, 0, 1, 1], [], []>} : vector<8x128xf32>, vector<128x128xf32>, vector<8x128xf32> -> vector<8x128xf32>
    %66 = arith.addf %65, %2 : vector<8x128xf32>
    %67 = vector.broadcast %64 : vector<1x128xf32> to vector<8x128xf32>
    %68 = arith.addf %66, %67 : vector<8x128xf32>
    %69 = arith.mulf %68, %68 : vector<8x128xf32>
    %70 = arith.mulf %68, %69 : vector<8x128xf32>
    %cst_31 = arith.constant 4.471500e-02 : f32
    %71 = vector.broadcast %cst_31 : f32 to vector<8x128xf32>
    %72 = arith.mulf %71, %70 : vector<8x128xf32>
    %73 = arith.addf %68, %72 : vector<8x128xf32>
    %cst_32 = arith.constant 0.797884583 : f32
    %74 = vector.broadcast %cst_32 : f32 to vector<8x128xf32>
    %75 = arith.mulf %74, %73 : vector<8x128xf32>
    %76 = math.tanh %75 : vector<8x128xf32>
    %cst_33 = arith.constant 1.000000e+00 : f32
    %77 = vector.broadcast %cst_33 : f32 to vector<8x128xf32>
    %78 = arith.addf %77, %76 : vector<8x128xf32>
    %cst_34 = arith.constant 5.000000e-01 : f32
    %79 = vector.broadcast %cst_34 : f32 to vector<8x128xf32>
    %80 = arith.mulf %79, %78 : vector<8x128xf32>
    %81 = arith.mulf %68, %80 : vector<8x128xf32>
    %cst_35 = arith.constant dense<0.000000e+00> : vector<8x128xf32>
    %82 = tpu.matmul %81, %4, %cst_35 {dimension_numbers = #tpu.dot_dimension_numbers<[1], [0], [0], [1], [0, 0, 1, 1], [], []>} : vector<8x128xf32>, vector<128x128xf32>, vector<8x128xf32> -> vector<8x128xf32>
    %83 = vector.broadcast %5 : vector<1x128xf32> to vector<8x128xf32>
    %84 = arith.addf %82, %83 : vector<8x128xf32>
    %85 = arith.mulf %84, %1 : vector<8x128xf32>
    %c2_36 = arith.constant 2 : index
    %86 = memref.load %arg7[%c2_36] : memref<14xf32, #tpu.memory_space<smem>>
    %87 = vector.broadcast %86 : f32 to vector<8x128xf32>
    %88 = arith.mulf %87, %63 : vector<8x128xf32>
    %c2_37 = arith.constant 2 : index
    %89 = memref.load %arg8[%c2_37] : memref<14xf32, #tpu.memory_space<smem>>
    %90 = vector.broadcast %89 : f32 to vector<8x128xf32>
    %91 = arith.mulf %90, %85 : vector<8x128xf32>
    %92 = arith.addf %88, %91 : vector<8x128xf32>
    %c3 = arith.constant 3 : index
    %c0_38 = arith.constant 0 : index
    %93 = vector.load %arg3[%c3, %c0_38] : memref<14x128xf32, #tpu.memory_space<vmem>>, vector<1x128xf32>
    %cst_39 = arith.constant dense<0.000000e+00> : vector<8x128xf32>
    %94 = tpu.matmul %92, %3, %cst_39 {dimension_numbers = #tpu.dot_dimension_numbers<[1], [0], [0], [1], [0, 0, 1, 1], [], []>} : vector<8x128xf32>, vector<128x128xf32>, vector<8x128xf32> -> vector<8x128xf32>
    %95 = arith.addf %94, %2 : vector<8x128xf32>
    %96 = vector.broadcast %93 : vector<1x128xf32> to vector<8x128xf32>
    %97 = arith.addf %95, %96 : vector<8x128xf32>
    %98 = arith.mulf %97, %97 : vector<8x128xf32>
    %99 = arith.mulf %97, %98 : vector<8x128xf32>
    %cst_40 = arith.constant 4.471500e-02 : f32
    %100 = vector.broadcast %cst_40 : f32 to vector<8x128xf32>
    %101 = arith.mulf %100, %99 : vector<8x128xf32>
    %102 = arith.addf %97, %101 : vector<8x128xf32>
    %cst_41 = arith.constant 0.797884583 : f32
    %103 = vector.broadcast %cst_41 : f32 to vector<8x128xf32>
    %104 = arith.mulf %103, %102 : vector<8x128xf32>
    %105 = math.tanh %104 : vector<8x128xf32>
    %cst_42 = arith.constant 1.000000e+00 : f32
    %106 = vector.broadcast %cst_42 : f32 to vector<8x128xf32>
    %107 = arith.addf %106, %105 : vector<8x128xf32>
    %cst_43 = arith.constant 5.000000e-01 : f32
    %108 = vector.broadcast %cst_43 : f32 to vector<8x128xf32>
    %109 = arith.mulf %108, %107 : vector<8x128xf32>
    %110 = arith.mulf %97, %109 : vector<8x128xf32>
    %cst_44 = arith.constant dense<0.000000e+00> : vector<8x128xf32>
    %111 = tpu.matmul %110, %4, %cst_44 {dimension_numbers = #tpu.dot_dimension_numbers<[1], [0], [0], [1], [0, 0, 1, 1], [], []>} : vector<8x128xf32>, vector<128x128xf32>, vector<8x128xf32> -> vector<8x128xf32>
    %112 = vector.broadcast %5 : vector<1x128xf32> to vector<8x128xf32>
    %113 = arith.addf %111, %112 : vector<8x128xf32>
    %114 = arith.mulf %113, %1 : vector<8x128xf32>
    %c3_45 = arith.constant 3 : index
    %115 = memref.load %arg7[%c3_45] : memref<14xf32, #tpu.memory_space<smem>>
    %116 = vector.broadcast %115 : f32 to vector<8x128xf32>
    %117 = arith.mulf %116, %92 : vector<8x128xf32>
    %c3_46 = arith.constant 3 : index
    %118 = memref.load %arg8[%c3_46] : memref<14xf32, #tpu.memory_space<smem>>
    %119 = vector.broadcast %118 : f32 to vector<8x128xf32>
    %120 = arith.mulf %119, %114 : vector<8x128xf32>
    %121 = arith.addf %117, %120 : vector<8x128xf32>
    %c4 = arith.constant 4 : index
    %c0_47 = arith.constant 0 : index
    %122 = vector.load %arg3[%c4, %c0_47] : memref<14x128xf32, #tpu.memory_space<vmem>>, vector<1x128xf32>
    %cst_48 = arith.constant dense<0.000000e+00> : vector<8x128xf32>
    %123 = tpu.matmul %121, %3, %cst_48 {dimension_numbers = #tpu.dot_dimension_numbers<[1], [0], [0], [1], [0, 0, 1, 1], [], []>} : vector<8x128xf32>, vector<128x128xf32>, vector<8x128xf32> -> vector<8x128xf32>
    %124 = arith.addf %123, %2 : vector<8x128xf32>
    %125 = vector.broadcast %122 : vector<1x128xf32> to vector<8x128xf32>
    %126 = arith.addf %124, %125 : vector<8x128xf32>
    %127 = arith.mulf %126, %126 : vector<8x128xf32>
    %128 = arith.mulf %126, %127 : vector<8x128xf32>
    %cst_49 = arith.constant 4.471500e-02 : f32
    %129 = vector.broadcast %cst_49 : f32 to vector<8x128xf32>
    %130 = arith.mulf %129, %128 : vector<8x128xf32>
    %131 = arith.addf %126, %130 : vector<8x128xf32>
    %cst_50 = arith.constant 0.797884583 : f32
    %132 = vector.broadcast %cst_50 : f32 to vector<8x128xf32>
    %133 = arith.mulf %132, %131 : vector<8x128xf32>
    %134 = math.tanh %133 : vector<8x128xf32>
    %cst_51 = arith.constant 1.000000e+00 : f32
    %135 = vector.broadcast %cst_51 : f32 to vector<8x128xf32>
    %136 = arith.addf %135, %134 : vector<8x128xf32>
    %cst_52 = arith.constant 5.000000e-01 : f32
    %137 = vector.broadcast %cst_52 : f32 to vector<8x128xf32>
    %138 = arith.mulf %137, %136 : vector<8x128xf32>
    %139 = arith.mulf %126, %138 : vector<8x128xf32>
    %cst_53 = arith.constant dense<0.000000e+00> : vector<8x128xf32>
    %140 = tpu.matmul %139, %4, %cst_53 {dimension_numbers = #tpu.dot_dimension_numbers<[1], [0], [0], [1], [0, 0, 1, 1], [], []>} : vector<8x128xf32>, vector<128x128xf32>, vector<8x128xf32> -> vector<8x128xf32>
    %141 = vector.broadcast %5 : vector<1x128xf32> to vector<8x128xf32>
    %142 = arith.addf %140, %141 : vector<8x128xf32>
    %143 = arith.mulf %142, %1 : vector<8x128xf32>
    %c4_54 = arith.constant 4 : index
    %144 = memref.load %arg7[%c4_54] : memref<14xf32, #tpu.memory_space<smem>>
    %145 = vector.broadcast %144 : f32 to vector<8x128xf32>
    %146 = arith.mulf %145, %121 : vector<8x128xf32>
    %c4_55 = arith.constant 4 : index
    %147 = memref.load %arg8[%c4_55] : memref<14xf32, #tpu.memory_space<smem>>
    %148 = vector.broadcast %147 : f32 to vector<8x128xf32>
    %149 = arith.mulf %148, %143 : vector<8x128xf32>
    %150 = arith.addf %146, %149 : vector<8x128xf32>
    %c5 = arith.constant 5 : index
    %c0_56 = arith.constant 0 : index
    %151 = vector.load %arg3[%c5, %c0_56] : memref<14x128xf32, #tpu.memory_space<vmem>>, vector<1x128xf32>
    %cst_57 = arith.constant dense<0.000000e+00> : vector<8x128xf32>
    %152 = tpu.matmul %150, %3, %cst_57 {dimension_numbers = #tpu.dot_dimension_numbers<[1], [0], [0], [1], [0, 0, 1, 1], [], []>} : vector<8x128xf32>, vector<128x128xf32>, vector<8x128xf32> -> vector<8x128xf32>
    %153 = arith.addf %152, %2 : vector<8x128xf32>
    %154 = vector.broadcast %151 : vector<1x128xf32> to vector<8x128xf32>
    %155 = arith.addf %153, %154 : vector<8x128xf32>
    %156 = arith.mulf %155, %155 : vector<8x128xf32>
    %157 = arith.mulf %155, %156 : vector<8x128xf32>
    %cst_58 = arith.constant 4.471500e-02 : f32
    %158 = vector.broadcast %cst_58 : f32 to vector<8x128xf32>
    %159 = arith.mulf %158, %157 : vector<8x128xf32>
    %160 = arith.addf %155, %159 : vector<8x128xf32>
    %cst_59 = arith.constant 0.797884583 : f32
    %161 = vector.broadcast %cst_59 : f32 to vector<8x128xf32>
    %162 = arith.mulf %161, %160 : vector<8x128xf32>
    %163 = math.tanh %162 : vector<8x128xf32>
    %cst_60 = arith.constant 1.000000e+00 : f32
    %164 = vector.broadcast %cst_60 : f32 to vector<8x128xf32>
    %165 = arith.addf %164, %163 : vector<8x128xf32>
    %cst_61 = arith.constant 5.000000e-01 : f32
    %166 = vector.broadcast %cst_61 : f32 to vector<8x128xf32>
    %167 = arith.mulf %166, %165 : vector<8x128xf32>
    %168 = arith.mulf %155, %167 : vector<8x128xf32>
    %cst_62 = arith.constant dense<0.000000e+00> : vector<8x128xf32>
    %169 = tpu.matmul %168, %4, %cst_62 {dimension_numbers = #tpu.dot_dimension_numbers<[1], [0], [0], [1], [0, 0, 1, 1], [], []>} : vector<8x128xf32>, vector<128x128xf32>, vector<8x128xf32> -> vector<8x128xf32>
    %170 = vector.broadcast %5 : vector<1x128xf32> to vector<8x128xf32>
    %171 = arith.addf %169, %170 : vector<8x128xf32>
    %172 = arith.mulf %171, %1 : vector<8x128xf32>
    %c5_63 = arith.constant 5 : index
    %173 = memref.load %arg7[%c5_63] : memref<14xf32, #tpu.memory_space<smem>>
    %174 = vector.broadcast %173 : f32 to vector<8x128xf32>
    %175 = arith.mulf %174, %150 : vector<8x128xf32>
    %c5_64 = arith.constant 5 : index
    %176 = memref.load %arg8[%c5_64] : memref<14xf32, #tpu.memory_space<smem>>
    %177 = vector.broadcast %176 : f32 to vector<8x128xf32>
    %178 = arith.mulf %177, %172 : vector<8x128xf32>
    %179 = arith.addf %175, %178 : vector<8x128xf32>
    %c6 = arith.constant 6 : index
    %c0_65 = arith.constant 0 : index
    %180 = vector.load %arg3[%c6, %c0_65] : memref<14x128xf32, #tpu.memory_space<vmem>>, vector<1x128xf32>
    %cst_66 = arith.constant dense<0.000000e+00> : vector<8x128xf32>
    %181 = tpu.matmul %179, %3, %cst_66 {dimension_numbers = #tpu.dot_dimension_numbers<[1], [0], [0], [1], [0, 0, 1, 1], [], []>} : vector<8x128xf32>, vector<128x128xf32>, vector<8x128xf32> -> vector<8x128xf32>
    %182 = arith.addf %181, %2 : vector<8x128xf32>
    %183 = vector.broadcast %180 : vector<1x128xf32> to vector<8x128xf32>
    %184 = arith.addf %182, %183 : vector<8x128xf32>
    %185 = arith.mulf %184, %184 : vector<8x128xf32>
    %186 = arith.mulf %184, %185 : vector<8x128xf32>
    %cst_67 = arith.constant 4.471500e-02 : f32
    %187 = vector.broadcast %cst_67 : f32 to vector<8x128xf32>
    %188 = arith.mulf %187, %186 : vector<8x128xf32>
    %189 = arith.addf %184, %188 : vector<8x128xf32>
    %cst_68 = arith.constant 0.797884583 : f32
    %190 = vector.broadcast %cst_68 : f32 to vector<8x128xf32>
    %191 = arith.mulf %190, %189 : vector<8x128xf32>
    %192 = math.tanh %191 : vector<8x128xf32>
    %cst_69 = arith.constant 1.000000e+00 : f32
    %193 = vector.broadcast %cst_69 : f32 to vector<8x128xf32>
    %194 = arith.addf %193, %192 : vector<8x128xf32>
    %cst_70 = arith.constant 5.000000e-01 : f32
    %195 = vector.broadcast %cst_70 : f32 to vector<8x128xf32>
    %196 = arith.mulf %195, %194 : vector<8x128xf32>
    %197 = arith.mulf %184, %196 : vector<8x128xf32>
    %cst_71 = arith.constant dense<0.000000e+00> : vector<8x128xf32>
    %198 = tpu.matmul %197, %4, %cst_71 {dimension_numbers = #tpu.dot_dimension_numbers<[1], [0], [0], [1], [0, 0, 1, 1], [], []>} : vector<8x128xf32>, vector<128x128xf32>, vector<8x128xf32> -> vector<8x128xf32>
    %199 = vector.broadcast %5 : vector<1x128xf32> to vector<8x128xf32>
    %200 = arith.addf %198, %199 : vector<8x128xf32>
    %201 = arith.mulf %200, %1 : vector<8x128xf32>
    %c6_72 = arith.constant 6 : index
    %202 = memref.load %arg7[%c6_72] : memref<14xf32, #tpu.memory_space<smem>>
    %203 = vector.broadcast %202 : f32 to vector<8x128xf32>
    %204 = arith.mulf %203, %179 : vector<8x128xf32>
    %c6_73 = arith.constant 6 : index
    %205 = memref.load %arg8[%c6_73] : memref<14xf32, #tpu.memory_space<smem>>
    %206 = vector.broadcast %205 : f32 to vector<8x128xf32>
    %207 = arith.mulf %206, %201 : vector<8x128xf32>
    %208 = arith.addf %204, %207 : vector<8x128xf32>
    %c7 = arith.constant 7 : index
    %c0_74 = arith.constant 0 : index
    %209 = vector.load %arg3[%c7, %c0_74] : memref<14x128xf32, #tpu.memory_space<vmem>>, vector<1x128xf32>
    %cst_75 = arith.constant dense<0.000000e+00> : vector<8x128xf32>
    %210 = tpu.matmul %208, %3, %cst_75 {dimension_numbers = #tpu.dot_dimension_numbers<[1], [0], [0], [1], [0, 0, 1, 1], [], []>} : vector<8x128xf32>, vector<128x128xf32>, vector<8x128xf32> -> vector<8x128xf32>
    %211 = arith.addf %210, %2 : vector<8x128xf32>
    %212 = vector.broadcast %209 : vector<1x128xf32> to vector<8x128xf32>
    %213 = arith.addf %211, %212 : vector<8x128xf32>
    %214 = arith.mulf %213, %213 : vector<8x128xf32>
    %215 = arith.mulf %213, %214 : vector<8x128xf32>
    %cst_76 = arith.constant 4.471500e-02 : f32
    %216 = vector.broadcast %cst_76 : f32 to vector<8x128xf32>
    %217 = arith.mulf %216, %215 : vector<8x128xf32>
    %218 = arith.addf %213, %217 : vector<8x128xf32>
    %cst_77 = arith.constant 0.797884583 : f32
    %219 = vector.broadcast %cst_77 : f32 to vector<8x128xf32>
    %220 = arith.mulf %219, %218 : vector<8x128xf32>
    %221 = math.tanh %220 : vector<8x128xf32>
    %cst_78 = arith.constant 1.000000e+00 : f32
    %222 = vector.broadcast %cst_78 : f32 to vector<8x128xf32>
    %223 = arith.addf %222, %221 : vector<8x128xf32>
    %cst_79 = arith.constant 5.000000e-01 : f32
    %224 = vector.broadcast %cst_79 : f32 to vector<8x128xf32>
    %225 = arith.mulf %224, %223 : vector<8x128xf32>
    %226 = arith.mulf %213, %225 : vector<8x128xf32>
    %cst_80 = arith.constant dense<0.000000e+00> : vector<8x128xf32>
    %227 = tpu.matmul %226, %4, %cst_80 {dimension_numbers = #tpu.dot_dimension_numbers<[1], [0], [0], [1], [0, 0, 1, 1], [], []>} : vector<8x128xf32>, vector<128x128xf32>, vector<8x128xf32> -> vector<8x128xf32>
    %228 = vector.broadcast %5 : vector<1x128xf32> to vector<8x128xf32>
    %229 = arith.addf %227, %228 : vector<8x128xf32>
    %230 = arith.mulf %229, %1 : vector<8x128xf32>
    %c7_81 = arith.constant 7 : index
    %231 = memref.load %arg7[%c7_81] : memref<14xf32, #tpu.memory_space<smem>>
    %232 = vector.broadcast %231 : f32 to vector<8x128xf32>
    %233 = arith.mulf %232, %208 : vector<8x128xf32>
    %c7_82 = arith.constant 7 : index
    %234 = memref.load %arg8[%c7_82] : memref<14xf32, #tpu.memory_space<smem>>
    %235 = vector.broadcast %234 : f32 to vector<8x128xf32>
    %236 = arith.mulf %235, %230 : vector<8x128xf32>
    %237 = arith.addf %233, %236 : vector<8x128xf32>
    %c8 = arith.constant 8 : index
    %c0_83 = arith.constant 0 : index
    %238 = vector.load %arg3[%c8, %c0_83] : memref<14x128xf32, #tpu.memory_space<vmem>>, vector<1x128xf32>
    %cst_84 = arith.constant dense<0.000000e+00> : vector<8x128xf32>
    %239 = tpu.matmul %237, %3, %cst_84 {dimension_numbers = #tpu.dot_dimension_numbers<[1], [0], [0], [1], [0, 0, 1, 1], [], []>} : vector<8x128xf32>, vector<128x128xf32>, vector<8x128xf32> -> vector<8x128xf32>
    %240 = arith.addf %239, %2 : vector<8x128xf32>
    %241 = vector.broadcast %238 : vector<1x128xf32> to vector<8x128xf32>
    %242 = arith.addf %240, %241 : vector<8x128xf32>
    %243 = arith.mulf %242, %242 : vector<8x128xf32>
    %244 = arith.mulf %242, %243 : vector<8x128xf32>
    %cst_85 = arith.constant 4.471500e-02 : f32
    %245 = vector.broadcast %cst_85 : f32 to vector<8x128xf32>
    %246 = arith.mulf %245, %244 : vector<8x128xf32>
    %247 = arith.addf %242, %246 : vector<8x128xf32>
    %cst_86 = arith.constant 0.797884583 : f32
    %248 = vector.broadcast %cst_86 : f32 to vector<8x128xf32>
    %249 = arith.mulf %248, %247 : vector<8x128xf32>
    %250 = math.tanh %249 : vector<8x128xf32>
    %cst_87 = arith.constant 1.000000e+00 : f32
    %251 = vector.broadcast %cst_87 : f32 to vector<8x128xf32>
    %252 = arith.addf %251, %250 : vector<8x128xf32>
    %cst_88 = arith.constant 5.000000e-01 : f32
    %253 = vector.broadcast %cst_88 : f32 to vector<8x128xf32>
    %254 = arith.mulf %253, %252 : vector<8x128xf32>
    %255 = arith.mulf %242, %254 : vector<8x128xf32>
    %cst_89 = arith.constant dense<0.000000e+00> : vector<8x128xf32>
    %256 = tpu.matmul %255, %4, %cst_89 {dimension_numbers = #tpu.dot_dimension_numbers<[1], [0], [0], [1], [0, 0, 1, 1], [], []>} : vector<8x128xf32>, vector<128x128xf32>, vector<8x128xf32> -> vector<8x128xf32>
    %257 = vector.broadcast %5 : vector<1x128xf32> to vector<8x128xf32>
    %258 = arith.addf %256, %257 : vector<8x128xf32>
    %259 = arith.mulf %258, %1 : vector<8x128xf32>
    %c8_90 = arith.constant 8 : index
    %260 = memref.load %arg7[%c8_90] : memref<14xf32, #tpu.memory_space<smem>>
    %261 = vector.broadcast %260 : f32 to vector<8x128xf32>
    %262 = arith.mulf %261, %237 : vector<8x128xf32>
    %c8_91 = arith.constant 8 : index
    %263 = memref.load %arg8[%c8_91] : memref<14xf32, #tpu.memory_space<smem>>
    %264 = vector.broadcast %263 : f32 to vector<8x128xf32>
    %265 = arith.mulf %264, %259 : vector<8x128xf32>
    %266 = arith.addf %262, %265 : vector<8x128xf32>
    %c9 = arith.constant 9 : index
    %c0_92 = arith.constant 0 : index
    %267 = vector.load %arg3[%c9, %c0_92] : memref<14x128xf32, #tpu.memory_space<vmem>>, vector<1x128xf32>
    %cst_93 = arith.constant dense<0.000000e+00> : vector<8x128xf32>
    %268 = tpu.matmul %266, %3, %cst_93 {dimension_numbers = #tpu.dot_dimension_numbers<[1], [0], [0], [1], [0, 0, 1, 1], [], []>} : vector<8x128xf32>, vector<128x128xf32>, vector<8x128xf32> -> vector<8x128xf32>
    %269 = arith.addf %268, %2 : vector<8x128xf32>
    %270 = vector.broadcast %267 : vector<1x128xf32> to vector<8x128xf32>
    %271 = arith.addf %269, %270 : vector<8x128xf32>
    %272 = arith.mulf %271, %271 : vector<8x128xf32>
    %273 = arith.mulf %271, %272 : vector<8x128xf32>
    %cst_94 = arith.constant 4.471500e-02 : f32
    %274 = vector.broadcast %cst_94 : f32 to vector<8x128xf32>
    %275 = arith.mulf %274, %273 : vector<8x128xf32>
    %276 = arith.addf %271, %275 : vector<8x128xf32>
    %cst_95 = arith.constant 0.797884583 : f32
    %277 = vector.broadcast %cst_95 : f32 to vector<8x128xf32>
    %278 = arith.mulf %277, %276 : vector<8x128xf32>
    %279 = math.tanh %278 : vector<8x128xf32>
    %cst_96 = arith.constant 1.000000e+00 : f32
    %280 = vector.broadcast %cst_96 : f32 to vector<8x128xf32>
    %281 = arith.addf %280, %279 : vector<8x128xf32>
    %cst_97 = arith.constant 5.000000e-01 : f32
    %282 = vector.broadcast %cst_97 : f32 to vector<8x128xf32>
    %283 = arith.mulf %282, %281 : vector<8x128xf32>
    %284 = arith.mulf %271, %283 : vector<8x128xf32>
    %cst_98 = arith.constant dense<0.000000e+00> : vector<8x128xf32>
    %285 = tpu.matmul %284, %4, %cst_98 {dimension_numbers = #tpu.dot_dimension_numbers<[1], [0], [0], [1], [0, 0, 1, 1], [], []>} : vector<8x128xf32>, vector<128x128xf32>, vector<8x128xf32> -> vector<8x128xf32>
    %286 = vector.broadcast %5 : vector<1x128xf32> to vector<8x128xf32>
    %287 = arith.addf %285, %286 : vector<8x128xf32>
    %288 = arith.mulf %287, %1 : vector<8x128xf32>
    %c9_99 = arith.constant 9 : index
    %289 = memref.load %arg7[%c9_99] : memref<14xf32, #tpu.memory_space<smem>>
    %290 = vector.broadcast %289 : f32 to vector<8x128xf32>
    %291 = arith.mulf %290, %266 : vector<8x128xf32>
    %c9_100 = arith.constant 9 : index
    %292 = memref.load %arg8[%c9_100] : memref<14xf32, #tpu.memory_space<smem>>
    %293 = vector.broadcast %292 : f32 to vector<8x128xf32>
    %294 = arith.mulf %293, %288 : vector<8x128xf32>
    %295 = arith.addf %291, %294 : vector<8x128xf32>
    %c10 = arith.constant 10 : index
    %c0_101 = arith.constant 0 : index
    %296 = vector.load %arg3[%c10, %c0_101] : memref<14x128xf32, #tpu.memory_space<vmem>>, vector<1x128xf32>
    %cst_102 = arith.constant dense<0.000000e+00> : vector<8x128xf32>
    %297 = tpu.matmul %295, %3, %cst_102 {dimension_numbers = #tpu.dot_dimension_numbers<[1], [0], [0], [1], [0, 0, 1, 1], [], []>} : vector<8x128xf32>, vector<128x128xf32>, vector<8x128xf32> -> vector<8x128xf32>
    %298 = arith.addf %297, %2 : vector<8x128xf32>
    %299 = vector.broadcast %296 : vector<1x128xf32> to vector<8x128xf32>
    %300 = arith.addf %298, %299 : vector<8x128xf32>
    %301 = arith.mulf %300, %300 : vector<8x128xf32>
    %302 = arith.mulf %300, %301 : vector<8x128xf32>
    %cst_103 = arith.constant 4.471500e-02 : f32
    %303 = vector.broadcast %cst_103 : f32 to vector<8x128xf32>
    %304 = arith.mulf %303, %302 : vector<8x128xf32>
    %305 = arith.addf %300, %304 : vector<8x128xf32>
    %cst_104 = arith.constant 0.797884583 : f32
    %306 = vector.broadcast %cst_104 : f32 to vector<8x128xf32>
    %307 = arith.mulf %306, %305 : vector<8x128xf32>
    %308 = math.tanh %307 : vector<8x128xf32>
    %cst_105 = arith.constant 1.000000e+00 : f32
    %309 = vector.broadcast %cst_105 : f32 to vector<8x128xf32>
    %310 = arith.addf %309, %308 : vector<8x128xf32>
    %cst_106 = arith.constant 5.000000e-01 : f32
    %311 = vector.broadcast %cst_106 : f32 to vector<8x128xf32>
    %312 = arith.mulf %311, %310 : vector<8x128xf32>
    %313 = arith.mulf %300, %312 : vector<8x128xf32>
    %cst_107 = arith.constant dense<0.000000e+00> : vector<8x128xf32>
    %314 = tpu.matmul %313, %4, %cst_107 {dimension_numbers = #tpu.dot_dimension_numbers<[1], [0], [0], [1], [0, 0, 1, 1], [], []>} : vector<8x128xf32>, vector<128x128xf32>, vector<8x128xf32> -> vector<8x128xf32>
    %315 = vector.broadcast %5 : vector<1x128xf32> to vector<8x128xf32>
    %316 = arith.addf %314, %315 : vector<8x128xf32>
    %317 = arith.mulf %316, %1 : vector<8x128xf32>
    %c10_108 = arith.constant 10 : index
    %318 = memref.load %arg7[%c10_108] : memref<14xf32, #tpu.memory_space<smem>>
    %319 = vector.broadcast %318 : f32 to vector<8x128xf32>
    %320 = arith.mulf %319, %295 : vector<8x128xf32>
    %c10_109 = arith.constant 10 : index
    %321 = memref.load %arg8[%c10_109] : memref<14xf32, #tpu.memory_space<smem>>
    %322 = vector.broadcast %321 : f32 to vector<8x128xf32>
    %323 = arith.mulf %322, %317 : vector<8x128xf32>
    %324 = arith.addf %320, %323 : vector<8x128xf32>
    %c11 = arith.constant 11 : index
    %c0_110 = arith.constant 0 : index
    %325 = vector.load %arg3[%c11, %c0_110] : memref<14x128xf32, #tpu.memory_space<vmem>>, vector<1x128xf32>
    %cst_111 = arith.constant dense<0.000000e+00> : vector<8x128xf32>
    %326 = tpu.matmul %324, %3, %cst_111 {dimension_numbers = #tpu.dot_dimension_numbers<[1], [0], [0], [1], [0, 0, 1, 1], [], []>} : vector<8x128xf32>, vector<128x128xf32>, vector<8x128xf32> -> vector<8x128xf32>
    %327 = arith.addf %326, %2 : vector<8x128xf32>
    %328 = vector.broadcast %325 : vector<1x128xf32> to vector<8x128xf32>
    %329 = arith.addf %327, %328 : vector<8x128xf32>
    %330 = arith.mulf %329, %329 : vector<8x128xf32>
    %331 = arith.mulf %329, %330 : vector<8x128xf32>
    %cst_112 = arith.constant 4.471500e-02 : f32
    %332 = vector.broadcast %cst_112 : f32 to vector<8x128xf32>
    %333 = arith.mulf %332, %331 : vector<8x128xf32>
    %334 = arith.addf %329, %333 : vector<8x128xf32>
    %cst_113 = arith.constant 0.797884583 : f32
    %335 = vector.broadcast %cst_113 : f32 to vector<8x128xf32>
    %336 = arith.mulf %335, %334 : vector<8x128xf32>
    %337 = math.tanh %336 : vector<8x128xf32>
    %cst_114 = arith.constant 1.000000e+00 : f32
    %338 = vector.broadcast %cst_114 : f32 to vector<8x128xf32>
    %339 = arith.addf %338, %337 : vector<8x128xf32>
    %cst_115 = arith.constant 5.000000e-01 : f32
    %340 = vector.broadcast %cst_115 : f32 to vector<8x128xf32>
    %341 = arith.mulf %340, %339 : vector<8x128xf32>
    %342 = arith.mulf %329, %341 : vector<8x128xf32>
    %cst_116 = arith.constant dense<0.000000e+00> : vector<8x128xf32>
    %343 = tpu.matmul %342, %4, %cst_116 {dimension_numbers = #tpu.dot_dimension_numbers<[1], [0], [0], [1], [0, 0, 1, 1], [], []>} : vector<8x128xf32>, vector<128x128xf32>, vector<8x128xf32> -> vector<8x128xf32>
    %344 = vector.broadcast %5 : vector<1x128xf32> to vector<8x128xf32>
    %345 = arith.addf %343, %344 : vector<8x128xf32>
    %346 = arith.mulf %345, %1 : vector<8x128xf32>
    %c11_117 = arith.constant 11 : index
    %347 = memref.load %arg7[%c11_117] : memref<14xf32, #tpu.memory_space<smem>>
    %348 = vector.broadcast %347 : f32 to vector<8x128xf32>
    %349 = arith.mulf %348, %324 : vector<8x128xf32>
    %c11_118 = arith.constant 11 : index
    %350 = memref.load %arg8[%c11_118] : memref<14xf32, #tpu.memory_space<smem>>
    %351 = vector.broadcast %350 : f32 to vector<8x128xf32>
    %352 = arith.mulf %351, %346 : vector<8x128xf32>
    %353 = arith.addf %349, %352 : vector<8x128xf32>
    %c12 = arith.constant 12 : index
    %c0_119 = arith.constant 0 : index
    %354 = vector.load %arg3[%c12, %c0_119] : memref<14x128xf32, #tpu.memory_space<vmem>>, vector<1x128xf32>
    %cst_120 = arith.constant dense<0.000000e+00> : vector<8x128xf32>
    %355 = tpu.matmul %353, %3, %cst_120 {dimension_numbers = #tpu.dot_dimension_numbers<[1], [0], [0], [1], [0, 0, 1, 1], [], []>} : vector<8x128xf32>, vector<128x128xf32>, vector<8x128xf32> -> vector<8x128xf32>
    %356 = arith.addf %355, %2 : vector<8x128xf32>
    %357 = vector.broadcast %354 : vector<1x128xf32> to vector<8x128xf32>
    %358 = arith.addf %356, %357 : vector<8x128xf32>
    %359 = arith.mulf %358, %358 : vector<8x128xf32>
    %360 = arith.mulf %358, %359 : vector<8x128xf32>
    %cst_121 = arith.constant 4.471500e-02 : f32
    %361 = vector.broadcast %cst_121 : f32 to vector<8x128xf32>
    %362 = arith.mulf %361, %360 : vector<8x128xf32>
    %363 = arith.addf %358, %362 : vector<8x128xf32>
    %cst_122 = arith.constant 0.797884583 : f32
    %364 = vector.broadcast %cst_122 : f32 to vector<8x128xf32>
    %365 = arith.mulf %364, %363 : vector<8x128xf32>
    %366 = math.tanh %365 : vector<8x128xf32>
    %cst_123 = arith.constant 1.000000e+00 : f32
    %367 = vector.broadcast %cst_123 : f32 to vector<8x128xf32>
    %368 = arith.addf %367, %366 : vector<8x128xf32>
    %cst_124 = arith.constant 5.000000e-01 : f32
    %369 = vector.broadcast %cst_124 : f32 to vector<8x128xf32>
    %370 = arith.mulf %369, %368 : vector<8x128xf32>
    %371 = arith.mulf %358, %370 : vector<8x128xf32>
    %cst_125 = arith.constant dense<0.000000e+00> : vector<8x128xf32>
    %372 = tpu.matmul %371, %4, %cst_125 {dimension_numbers = #tpu.dot_dimension_numbers<[1], [0], [0], [1], [0, 0, 1, 1], [], []>} : vector<8x128xf32>, vector<128x128xf32>, vector<8x128xf32> -> vector<8x128xf32>
    %373 = vector.broadcast %5 : vector<1x128xf32> to vector<8x128xf32>
    %374 = arith.addf %372, %373 : vector<8x128xf32>
    %375 = arith.mulf %374, %1 : vector<8x128xf32>
    %c12_126 = arith.constant 12 : index
    %376 = memref.load %arg7[%c12_126] : memref<14xf32, #tpu.memory_space<smem>>
    %377 = vector.broadcast %376 : f32 to vector<8x128xf32>
    %378 = arith.mulf %377, %353 : vector<8x128xf32>
    %c12_127 = arith.constant 12 : index
    %379 = memref.load %arg8[%c12_127] : memref<14xf32, #tpu.memory_space<smem>>
    %380 = vector.broadcast %379 : f32 to vector<8x128xf32>
    %381 = arith.mulf %380, %375 : vector<8x128xf32>
    %382 = arith.addf %378, %381 : vector<8x128xf32>
    %c13 = arith.constant 13 : index
    %c0_128 = arith.constant 0 : index
    %383 = vector.load %arg3[%c13, %c0_128] : memref<14x128xf32, #tpu.memory_space<vmem>>, vector<1x128xf32>
    %cst_129 = arith.constant dense<0.000000e+00> : vector<8x128xf32>
    %384 = tpu.matmul %382, %3, %cst_129 {dimension_numbers = #tpu.dot_dimension_numbers<[1], [0], [0], [1], [0, 0, 1, 1], [], []>} : vector<8x128xf32>, vector<128x128xf32>, vector<8x128xf32> -> vector<8x128xf32>
    %385 = arith.addf %384, %2 : vector<8x128xf32>
    %386 = vector.broadcast %383 : vector<1x128xf32> to vector<8x128xf32>
    %387 = arith.addf %385, %386 : vector<8x128xf32>
    %388 = arith.mulf %387, %387 : vector<8x128xf32>
    %389 = arith.mulf %387, %388 : vector<8x128xf32>
    %cst_130 = arith.constant 4.471500e-02 : f32
    %390 = vector.broadcast %cst_130 : f32 to vector<8x128xf32>
    %391 = arith.mulf %390, %389 : vector<8x128xf32>
    %392 = arith.addf %387, %391 : vector<8x128xf32>
    %cst_131 = arith.constant 0.797884583 : f32
    %393 = vector.broadcast %cst_131 : f32 to vector<8x128xf32>
    %394 = arith.mulf %393, %392 : vector<8x128xf32>
    %395 = math.tanh %394 : vector<8x128xf32>
    %cst_132 = arith.constant 1.000000e+00 : f32
    %396 = vector.broadcast %cst_132 : f32 to vector<8x128xf32>
    %397 = arith.addf %396, %395 : vector<8x128xf32>
    %cst_133 = arith.constant 5.000000e-01 : f32
    %398 = vector.broadcast %cst_133 : f32 to vector<8x128xf32>
    %399 = arith.mulf %398, %397 : vector<8x128xf32>
    %400 = arith.mulf %387, %399 : vector<8x128xf32>
    %cst_134 = arith.constant dense<0.000000e+00> : vector<8x128xf32>
    %401 = tpu.matmul %400, %4, %cst_134 {dimension_numbers = #tpu.dot_dimension_numbers<[1], [0], [0], [1], [0, 0, 1, 1], [], []>} : vector<8x128xf32>, vector<128x128xf32>, vector<8x128xf32> -> vector<8x128xf32>
    %402 = vector.broadcast %5 : vector<1x128xf32> to vector<8x128xf32>
    %403 = arith.addf %401, %402 : vector<8x128xf32>
    %404 = arith.mulf %403, %1 : vector<8x128xf32>
    %c13_135 = arith.constant 13 : index
    %405 = memref.load %arg7[%c13_135] : memref<14xf32, #tpu.memory_space<smem>>
    %406 = vector.broadcast %405 : f32 to vector<8x128xf32>
    %407 = arith.mulf %406, %382 : vector<8x128xf32>
    %c13_136 = arith.constant 13 : index
    %408 = memref.load %arg8[%c13_136] : memref<14xf32, #tpu.memory_space<smem>>
    %409 = vector.broadcast %408 : f32 to vector<8x128xf32>
    %410 = arith.mulf %409, %404 : vector<8x128xf32>
    %411 = arith.addf %407, %410 : vector<8x128xf32>
    %c0_137 = arith.constant 0 : index
    %c0_138 = arith.constant 0 : index
    %412 = vector.load %arg9[%c0_137, %c0_138] : memref<8x128xf32, #tpu.memory_space<vmem>>, vector<8x128xf32>
    tpu.vector_store %arg9[%c0_137, %c0_138], %411 {strides = array<i32>} : memref<8x128xf32, #tpu.memory_space<vmem>>, vector<8x128xf32>,
    return
  }
}

</mosaic_0001>

<llo_original>
// kernel: tpu_custom_call.1
$region0: #{tpu_custom_call.1}
  #allocation0 [shape = 'u32[]', space=smem, size = 0x4, offset = 0x4, fixed_abs, tag = 'smem constant byte address 0x4 - core index']
  #allocation1 [shape = 'u32[72,128]{1,0:T(1,128)}', space=vmem, size = 0x9000, scoped, tag = 'internal scratch']
  %s0 = inlined_call_operand.hbm [shape: f32[8,128], index: 0, kind: input, shape index: {}]
  %s1 = inlined_call_operand.hbm [shape: f32[8,128], index: 1, kind: input, shape index: {}]
  %s2 = inlined_call_operand.hbm [shape: f32[8,128], index: 2, kind: input, shape index: {}]
  %s3 = inlined_call_operand.hbm [shape: f32[14,128], index: 3, kind: input, shape index: {}]
  %s4 = inlined_call_operand.hbm [shape: f32[128,128], index: 4, kind: input, shape index: {}]
  %s5 = inlined_call_operand.hbm [shape: f32[128,128], index: 5, kind: input, shape index: {}]
  %s6 = inlined_call_operand.vmem [shape: f32[1,128], index: 6, kind: input, shape index: {}]
  %s7 = inlined_call_operand.vmem [shape: f32[14], index: 7, kind: input, shape index: {}]
  %s8 = inlined_call_operand.vmem [shape: f32[14], index: 8, kind: input, shape index: {}]
  %s9 = inlined_call_operand.hbm [shape: f32[8,128], index: 9, kind: output, shape index: {}]
  %s10 = sld [smem:[#allocation0]]
  $region78: #{tpu_custom_call.1} parent=0
    _
  %s12 = ssub.s32 1, %s10
  %s13 = scalar_select 0, %s12, %s10
  $region1: #{tpu_custom_call.1} parent=0
    #allocation2 [shape = 'u8[4096]{0}', space=vmem, size = 0x1000, scoped, tag = 'input window, operand 0, single buffered']
    #allocation3 [shape = 's32[1]{0}', space=sflag, size = 0x4, scoped, tag = 'scoped memory for tpu_custom_call.1']
    #allocation4 [shape = 's32[1]{0}', space=sflag, size = 0x4, scoped, tag = 'scoped memory for tpu_custom_call.1']
    #allocation5 [shape = 's32[1]{0}', space=sflag, size = 0x4, scoped, tag = 'scoped memory for tpu_custom_call.1']
    #allocation6 [shape = 'u8[4096]{0}', space=vmem, size = 0x1000, scoped, tag = 'input window, operand 1, single buffered']
    #allocation7 [shape = 's32[1]{0}', space=sflag, size = 0x4, scoped, tag = 'scoped memory for tpu_custom_call.1']
    #allocation8 [shape = 'u8[4096]{0}', space=vmem, size = 0x1000, scoped, tag = 'input window, operand 2, single buffered']
    #allocation9 [shape = 'u8[8192]{0}', space=vmem, size = 0x2000, scoped, tag = 'input window, operand 3, single buffered']
    #allocation10 [shape = 's32[1]{0}', space=sflag, size = 0x4, scoped, tag = 'scoped memory for tpu_custom_call.1']
    #allocation11 [shape = 'u8[65536]{0}', space=vmem, size = 0x10000, scoped, tag = 'input window, operand 4, single buffered']
    #allocation12 [shape = 'u8[65536]{0}', space=vmem, size = 0x10000, scoped, tag = 'input window, operand 5, single buffered']
    #allocation13 [shape = 's32[1]{0}', space=sflag, size = 0x4, scoped, tag = 'scoped memory for tpu_custom_call.1']
    #allocation14 [shape = 'u8[512]{0}', space=smem, size = 0x200, scoped, tag = 'input window, operand 7, single buffered']
    #allocation15 [shape = 'u8[512]{0}', space=smem, size = 0x200, scoped, tag = 'input window, operand 8, single buffered']
    #allocation16 [shape = 's32[1]{0}', space=sflag, size = 0x4, scoped, tag = 'scoped memory for tpu_custom_call.1']
    #allocation17 [shape = 'u8[4096]{0}', space=vmem, size = 0x1000, scoped, tag = 'output window, operand 0, single buffered']
    %14 = vsyncpa [#allocation3], 0
    %15 = vsyncpa [#allocation7], 0
    %16 = vsyncpa [#allocation10], 0
    %17 = vsyncpa [#allocation13], 0
    %18 = vsyncpa [#allocation5], 0
    %19 = vsyncpa [#allocation16], 0
    %20 = vsyncpa [#allocation4], 0
    // Predicated region
    $region2: #{tpu_custom_call.1} parent=1 // pred_check
      _
    $region3: #{tpu_custom_call.1} parent=1 // pred_check_branch
      %22 = sbr.rel (0) target = $region5
    $region4: #{tpu_custom_call.1} parent=1 // pred_region
      %24 = vsyncadd [#allocation3], 0
      %s26 = sshll.u32 %s0, 4
      %s27 = int_to_ptr.hbm [resolvable:$true] %s26
      %s28 = sshll.u32 [#allocation2], 4
      %s29 = int_to_ptr.vmem [resolvable:$true] %s28
      %31 = dma.hbm_to_vmem [thread:$0]  %s27, 128, %s29, [#allocation3]
    $region5: #{tpu_custom_call.1} parent=1 // pred_fallthru
      _
    // Predicated region
    $region6: #{tpu_custom_call.1} parent=1 // pred_check
      _
    $region7: #{tpu_custom_call.1} parent=1 // pred_check_branch
      %33 = sbr.rel (0) target = $region9
    $region8: #{tpu_custom_call.1} parent=1 // pred_region
      %35 = vsyncadd [#allocation7], 0
      %s37 = sshll.u32 %s1, 4
      %s38 = int_to_ptr.hbm [resolvable:$true] %s37
      %s39 = sshll.u32 [#allocation6], 4
      %s40 = int_to_ptr.vmem [resolvable:$true] %s39
      %42 = dma.hbm_to_vmem [thread:$0]  %s38, 128, %s40, [#allocation7]
    $region9: #{tpu_custom_call.1} parent=1 // pred_fallthru
      _
    // Predicated region
    $region10: #{tpu_custom_call.1} parent=1 // pred_check
      _
    $region11: #{tpu_custom_call.1} parent=1 // pred_check_branch
      %44 = sbr.rel (0) target = $region13
    $region12: #{tpu_custom_call.1} parent=1 // pred_region
      %46 = vsyncadd [#allocation7], 0
      %s48 = sshll.u32 %s2, 4
      %s49 = int_to_ptr.hbm [resolvable:$true] %s48
      %s50 = sshll.u32 [#allocation8], 4
      %s51 = int_to_ptr.vmem [resolvable:$true] %s50
      %53 = dma.hbm_to_vmem [thread:$0]  %s49, 128, %s51, [#allocation7]
    $region13: #{tpu_custom_call.1} parent=1 // pred_fallthru
      _
    // Predicated region
    $region14: #{tpu_custom_call.1} parent=1 // pred_check
      _
    $region15: #{tpu_custom_call.1} parent=1 // pred_check_branch
      %55 = sbr.rel (0) target = $region17
    $region16: #{tpu_custom_call.1} parent=1 // pred_region
      %57 = vsyncadd [#allocation10], 0
      %s58 = sshll.u32 %s3, 4
      %s59 = int_to_ptr.hbm [resolvable:$true] %s58
      %s60 = sshll.u32 [#allocation9], 4
      %s61 = int_to_ptr.vmem [resolvable:$true] %s60
      %66 = dma.hbm_to_vmem [thread:$0]  %s59, 256, %s61, [#allocation10], 128, 128, 8
    $region17: #{tpu_custom_call.1} parent=1 // pred_fallthru
      _
    // Predicated region
    $region18: #{tpu_custom_call.1} parent=1 // pred_check
      _
    $region19: #{tpu_custom_call.1} parent=1 // pred_check_branch
      %68 = sbr.rel (0) target = $region21
    $region20: #{tpu_custom_call.1} parent=1 // pred_region
      %70 = vsyncadd [#allocation10], 0
      %s71 = sshll.u32 %s4, 4
      %s72 = int_to_ptr.hbm [resolvable:$true] %s71
      %s73 = sshll.u32 [#allocation11], 4
      %s74 = int_to_ptr.vmem [resolvable:$true] %s73
      %79 = dma.hbm_to_vmem [thread:$0]  %s72, 2048, %s74, [#allocation10], 128, 128, 8
    $region21: #{tpu_custom_call.1} parent=1 // pred_fallthru
      _
    // Predicated region
    $region22: #{tpu_custom_call.1} parent=1 // pred_check
      _
    $region23: #{tpu_custom_call.1} parent=1 // pred_check_branch
      %81 = sbr.rel (0) target = $region25
    $region24: #{tpu_custom_call.1} parent=1 // pred_region
      %83 = vsyncadd [#allocation13], 0
      %s84 = sshll.u32 %s5, 4
      %s85 = int_to_ptr.hbm [resolvable:$true] %s84
      %s86 = sshll.u32 [#allocation12], 4
      %s87 = int_to_ptr.vmem [resolvable:$true] %s86
      %92 = dma.hbm_to_vmem [thread:$0]  %s85, 2048, %s87, [#allocation13], 128, 128, 8
    $region25: #{tpu_custom_call.1} parent=1 // pred_fallthru
      _
    // Predicated region
    $region26: #{tpu_custom_call.1} parent=1 // pred_check
      _
    $region27: #{tpu_custom_call.1} parent=1 // pred_check_branch
      %94 = sbr.rel (0) target = $region29
    $region28: #{tpu_custom_call.1} parent=1 // pred_region
      _
    $region29: #{tpu_custom_call.1} parent=1 // pred_fallthru
      _
    // Predicated region
    $region30: #{tpu_custom_call.1} parent=1 // pred_check
      _
    $region31: #{tpu_custom_call.1} parent=1 // pred_check_branch
      %96 = sbr.rel (0) target = $region33
    $region32: #{tpu_custom_call.1} parent=1 // pred_region
      %98 = vsyncadd [#allocation5], 0
      %s100 = sshll.u32 %s7, 4
      %s101 = int_to_ptr.vmem [resolvable:$true] %s100
      %103 = dma.vmem_to_smem %s101, 16, [#allocation14], [#allocation5]
    $region33: #{tpu_custom_call.1} parent=1 // pred_fallthru
      _
    // Predicated region
    $region34: #{tpu_custom_call.1} parent=1 // pred_check
      _
    $region35: #{tpu_custom_call.1} parent=1 // pred_check_branch
      %105 = sbr.rel (0) target = $region37
    $region36: #{tpu_custom_call.1} parent=1 // pred_region
      %107 = vsyncadd [#allocation16], 0
      %s109 = sshll.u32 %s8, 4
      %s110 = int_to_ptr.vmem [resolvable:$true] %s109
      %112 = dma.vmem_to_smem %s110, 16, [#allocation15], [#allocation16]
    $region37: #{tpu_custom_call.1} parent=1 // pred_fallthru
      _
    // Predicated region
    $region38: #{tpu_custom_call.1} parent=1 // pred_check
      _
    $region39: #{tpu_custom_call.1} parent=1 // pred_check_branch
      %114 = sbr.rel (0) target = $region41
    $region40: #{tpu_custom_call.1} parent=1 // pred_region
      %116 = dma.done [#allocation3], 128
    $region41: #{tpu_custom_call.1} parent=1 // pred_fallthru
      _
    // Predicated region
    $region42: #{tpu_custom_call.1} parent=1 // pred_check
      _
    $region43: #{tpu_custom_call.1} parent=1 // pred_check_branch
      %118 = sbr.rel (0) target = $region45
    $region44: #{tpu_custom_call.1} parent=1 // pred_region
      %120 = dma.done [#allocation7], 128
    $region45: #{tpu_custom_call.1} parent=1 // pred_fallthru
      _
    // Predicated region
    $region46: #{tpu_custom_call.1} parent=1 // pred_check
      _
    $region47: #{tpu_custom_call.1} parent=1 // pred_check_branch
      %122 = sbr.rel (0) target = $region49
    $region48: #{tpu_custom_call.1} parent=1 // pred_region
      %124 = dma.done [#allocation7], 128
    $region49: #{tpu_custom_call.1} parent=1 // pred_fallthru
      _
    // Predicated region
    $region50: #{tpu_custom_call.1} parent=1 // pred_check
      _
    $region51: #{tpu_custom_call.1} parent=1 // pred_check_branch
      %126 = sbr.rel (0) target = $region53
    $region52: #{tpu_custom_call.1} parent=1 // pred_region
      %128 = dma.done [#allocation10], 256
    $region53: #{tpu_custom_call.1} parent=1 // pred_fallthru
      _
    // Predicated region
    $region54: #{tpu_custom_call.1} parent=1 // pred_check
      _
    $region55: #{tpu_custom_call.1} parent=1 // pred_check_branch
      %130 = sbr.rel (0) target = $region57
    $region56: #{tpu_custom_call.1} parent=1 // pred_region
      %132 = dma.done [#allocation10], 2048
    $region57: #{tpu_custom_call.1} parent=1 // pred_fallthru
      _
    // Predicated region
    $region58: #{tpu_custom_call.1} parent=1 // pred_check
      _
    $region59: #{tpu_custom_call.1} parent=1 // pred_check_branch
      %134 = sbr.rel (0) target = $region61
    $region60: #{tpu_custom_call.1} parent=1 // pred_region
      %136 = dma.done [#allocation13], 2048
    $region61: #{tpu_custom_call.1} parent=1 // pred_fallthru
      _
    // Predicated region
    $region62: #{tpu_custom_call.1} parent=1 // pred_check
      _
    $region63: #{tpu_custom_call.1} parent=1 // pred_check_branch
      %138 = sbr.rel (0) target = $region65
    $region64: #{tpu_custom_call.1} parent=1 // pred_region
      %140 = dma.done [#allocation5], 16
    $region65: #{tpu_custom_call.1} parent=1 // pred_fallthru
      _
    // Predicated region
    $region66: #{tpu_custom_call.1} parent=1 // pred_check
      _
    $region67: #{tpu_custom_call.1} parent=1 // pred_check_branch
      %142 = sbr.rel (0) target = $region69
    $region68: #{tpu_custom_call.1} parent=1 // pred_region
      %144 = dma.done [#allocation16], 16
    $region69: #{tpu_custom_call.1} parent=1 // pred_fallthru
      _
    %145 = sfence
    %v146 = vld [vmem:[#allocation2] sm:$0xff]
    %v147 = vld [vmem:[#allocation6] sm:$0xff]
    %v148 = vld [vmem:[#allocation8] sm:$0xff]
    %v149 = vld [vmem:[#allocation11] sm:$0xff]
    %v150 = vld [vmem:[#allocation11 + $0x8] sm:$0xff]
    %v151 = vld [vmem:[#allocation11 + $0x10] sm:$0xff]
    %v152 = vld [vmem:[#allocation11 + $0x18] sm:$0xff]
    %v153 = vld [vmem:[#allocation11 + $0x20] sm:$0xff]
    %v154 = vld [vmem:[#allocation11 + $0x28] sm:$0xff]
    %v155 = vld [vmem:[#allocation11 + $0x30] sm:$0xff]
    %v156 = vld [vmem:[#allocation11 + $0x38] sm:$0xff]
    %v157 = vld [vmem:[#allocation11 + $0x40] sm:$0xff]
    %v158 = vld [vmem:[#allocation11 + $0x48] sm:$0xff]
    %v159 = vld [vmem:[#allocation11 + $0x50] sm:$0xff]
    %v160 = vld [vmem:[#allocation11 + $0x58] sm:$0xff]
    %v161 = vld [vmem:[#allocation11 + $0x60] sm:$0xff]
    %v162 = vld [vmem:[#allocation11 + $0x68] sm:$0xff]
    %v163 = vld [vmem:[#allocation11 + $0x70] sm:$0xff]
    %v164 = vld [vmem:[#allocation11 + $0x78] sm:$0xff]
    %v165 = vld [vmem:[#allocation12] sm:$0xff]
    %v166 = vld [vmem:[#allocation12 + $0x8] sm:$0xff]
    %v167 = vld [vmem:[#allocation12 + $0x10] sm:$0xff]
    %v168 = vld [vmem:[#allocation12 + $0x18] sm:$0xff]
    %v169 = vld [vmem:[#allocation12 + $0x20] sm:$0xff]
    %v170 = vld [vmem:[#allocation12 + $0x28] sm:$0xff]
    %v171 = vld [vmem:[#allocation12 + $0x30] sm:$0xff]
    %v172 = vld [vmem:[#allocation12 + $0x38] sm:$0xff]
    %v173 = vld [vmem:[#allocation12 + $0x40] sm:$0xff]
    %v174 = vld [vmem:[#allocation12 + $0x48] sm:$0xff]
    %v175 = vld [vmem:[#allocation12 + $0x50] sm:$0xff]
    %v176 = vld [vmem:[#allocation12 + $0x58] sm:$0xff]
    %v177 = vld [vmem:[#allocation12 + $0x60] sm:$0xff]
    %v178 = vld [vmem:[#allocation12 + $0x68] sm:$0xff]
    %v179 = vld [vmem:[#allocation12 + $0x70] sm:$0xff]
    %v180 = vld [vmem:[#allocation12 + $0x78] sm:$0xff]
    %v181 = vld [vmem:[%s6] sm:$0x1]
    %v182 = vld [vmem:[#allocation9] sm:$0x1]
    %183 = vmatpush.msra.mxu0 %v164
    %184 = vmatpush.msra.mxu0 %v163
    %185 = vmatpush.msra.mxu0 %v162
    %186 = vmatpush.msra.mxu0 %v161
    %187 = vmatpush.msra.mxu0 %v160
    %188 = vmatpush.msra.mxu0 %v159
    %189 = vmatpush.msra.mxu0 %v158
    %190 = vmatpush.msra.mxu0 %v157
    %191 = vmatpush.msra.mxu0 %v156
    %192 = vmatpush.msra.mxu0 %v155
    %193 = vmatpush.msra.mxu0 %v154
    %194 = vmatpush.msra.mxu0 %v153
    %195 = vmatpush.msra.mxu0 %v152
    %196 = vmatpush.msra.mxu0 %v151
    %197 = vmatpush.msra.mxu0 %v150
    %198 = vmatpush.msra.mxu0 %v149
    %199 = vmatmul.f32.gmra.mxu0 %v146
    %v200 = vpop.f32.mrf.mxu0
    %v201 = vadd.f32 %v148, %v200
    %202 = vdwg.mxu0
    %v203 = vperm.slane %v182, 0
    %v204 = vadd.f32 %v201, %v203
    %v205 = vmul.f32 %v204, %v204
    %v206 = vmul.f32 %v204, %v205
    %v207 = vmul.f32 %v206, 0.044715
    %v208 = vadd.f32 %v204, %v207
    %v209 = vmul.f32 %v208, 0.7978846
    %v210 = vtanh.pop %v209
    %v211 = vadd.f32 %v210, 1.0
    %v212 = vmul.f32 %v211, 0.5
    %v213 = vmul.f32 %v204, %v212
    %v215 = vperm.slane %v181, 0
    %217 = vmatpush.msra.mxu0 %v180
    %218 = vmatpush.msra.mxu0 %v179
    %219 = vmatpush.msra.mxu0 %v178
    %220 = vmatpush.msra.mxu0 %v177
    %221 = vmatpush.msra.mxu0 %v176
    %222 = vmatpush.msra.mxu0 %v175
    %223 = vmatpush.msra.mxu0 %v174
    %224 = vmatpush.msra.mxu0 %v173
    %225 = vmatpush.msra.mxu0 %v172
    %226 = vmatpush.msra.mxu0 %v171
    %227 = vmatpush.msra.mxu0 %v170
    %228 = vmatpush.msra.mxu0 %v169
    %229 = vmatpush.msra.mxu0 %v168
    %230 = vmatpush.msra.mxu0 %v167
    %231 = vmatpush.msra.mxu0 %v166
    %232 = vmatpush.msra.mxu0 %v165
    %233 = vmatmul.f32.gmra.mxu0 %v213
    %v234 = vpop.f32.mrf.mxu0
    %v235 = vadd.f32 %v215, %v234
    %236 = vdwg.mxu0
    %v237 = vmul.f32 %v235, %v147
    %s238 = sld [smem:[#allocation14]]
    %v239 = vstv %s238
    %v240 = vmul.f32 %v239, %v146
    %s241 = sld [smem:[#allocation15]]
    %v242 = vstv %s241
    %v243 = vmul.f32 %v242, %v237
    %v244 = vadd.f32 %v240, %v243
    %v245 = vld [vmem:[#allocation9 + $0x1] sm:$0x1]
    %246 = vmatpush.msra.mxu0 %v164
    %247 = vmatpush.msra.mxu0 %v163
    %248 = vmatpush.msra.mxu0 %v162
    %249 = vmatpush.msra.mxu0 %v161
    %250 = vmatpush.msra.mxu0 %v160
    %251 = vmatpush.msra.mxu0 %v159
    %252 = vmatpush.msra.mxu0 %v158
    %253 = vmatpush.msra.mxu0 %v157
    %254 = vmatpush.msra.mxu0 %v156
    %255 = vmatpush.msra.mxu0 %v155
    %256 = vmatpush.msra.mxu0 %v154
    %257 = vmatpush.msra.mxu0 %v153
    %258 = vmatpush.msra.mxu0 %v152
    %259 = vmatpush.msra.mxu0 %v151
    %260 = vmatpush.msra.mxu0 %v150
    %261 = vmatpush.msra.mxu0 %v149
    %262 = vmatmul.f32.gmra.mxu0 %v244
    %v263 = vpop.f32.mrf.mxu0
    %v264 = vadd.f32 %v148, %v263
    %265 = vdwg.mxu0
    %v266 = vperm.slane %v245, 0
    %v267 = vadd.f32 %v264, %v266
    %v268 = vmul.f32 %v267, %v267
    %v269 = vmul.f32 %v267, %v268
    %v270 = vmul.f32 %v269, 0.044715
    %v271 = vadd.f32 %v267, %v270
    %v272 = vmul.f32 %v271, 0.7978846
    %v273 = vtanh.pop %v272
    %v274 = vadd.f32 %v273, 1.0
    %v275 = vmul.f32 %v274, 0.5
    %v276 = vmul.f32 %v267, %v275
    %277 = vmatpush.msra.mxu0 %v180
    %278 = vmatpush.msra.mxu0 %v179
    %279 = vmatpush.msra.mxu0 %v178
    %280 = vmatpush.msra.mxu0 %v177
    %281 = vmatpush.msra.mxu0 %v176
    %282 = vmatpush.msra.mxu0 %v175
    %283 = vmatpush.msra.mxu0 %v174
    %284 = vmatpush.msra.mxu0 %v173
    %285 = vmatpush.msra.mxu0 %v172
    %286 = vmatpush.msra.mxu0 %v171
    %287 = vmatpush.msra.mxu0 %v170
    %288 = vmatpush.msra.mxu0 %v169
    %289 = vmatpush.msra.mxu0 %v168
    %290 = vmatpush.msra.mxu0 %v167
    %291 = vmatpush.msra.mxu0 %v166
    %292 = vmatpush.msra.mxu0 %v165
    %293 = vmatmul.f32.gmra.mxu0 %v276
    %v294 = vpop.f32.mrf.mxu0
    %v295 = vadd.f32 %v215, %v294
    %296 = vdwg.mxu0
    %v297 = vmul.f32 %v295, %v147
    %s298 = sld [smem:[#allocation14 + $0x1]]
    %v299 = vstv %s298
    %v300 = vmul.f32 %v299, %v244
    %s301 = sld [smem:[#allocation15 + $0x1]]
    %v302 = vstv %s301
    %v303 = vmul.f32 %v302, %v297
    %v304 = vadd.f32 %v300, %v303
    %v305 = vld [vmem:[#allocation9 + $0x2] sm:$0x1]
    %306 = vmatpush.msra.mxu0 %v164
    %307 = vmatpush.msra.mxu0 %v163
    %308 = vmatpush.msra.mxu0 %v162
    %309 = vmatpush.msra.mxu0 %v161
    %310 = vmatpush.msra.mxu0 %v160
    %311 = vmatpush.msra.mxu0 %v159
    %312 = vmatpush.msra.mxu0 %v158
    %313 = vmatpush.msra.mxu0 %v157
    %314 = vmatpush.msra.mxu0 %v156
    %315 = vmatpush.msra.mxu0 %v155
    %316 = vmatpush.msra.mxu0 %v154
    %317 = vmatpush.msra.mxu0 %v153
    %318 = vmatpush.msra.mxu0 %v152
    %319 = vmatpush.msra.mxu0 %v151
    %320 = vmatpush.msra.mxu0 %v150
    %321 = vmatpush.msra.mxu0 %v149
    %322 = vmatmul.f32.gmra.mxu0 %v304
    %v323 = vpop.f32.mrf.mxu0
    %v324 = vadd.f32 %v148, %v323
    %325 = vdwg.mxu0
    %v326 = vperm.slane %v305, 0
    %v327 = vadd.f32 %v324, %v326
    %v328 = vmul.f32 %v327, %v327
    %v329 = vmul.f32 %v327, %v328
    %v330 = vmul.f32 %v329, 0.044715
    %v331 = vadd.f32 %v327, %v330
    %v332 = vmul.f32 %v331, 0.7978846
    %v333 = vtanh.pop %v332
    %v334 = vadd.f32 %v333, 1.0
    %v335 = vmul.f32 %v334, 0.5
    %v336 = vmul.f32 %v327, %v335
    %337 = vmatpush.msra.mxu0 %v180
    %338 = vmatpush.msra.mxu0 %v179
    %339 = vmatpush.msra.mxu0 %v178
    %340 = vmatpush.msra.mxu0 %v177
    %341 = vmatpush.msra.mxu0 %v176
    %342 = vmatpush.msra.mxu0 %v175
    %343 = vmatpush.msra.mxu0 %v174
    %344 = vmatpush.msra.mxu0 %v173
    %345 = vmatpush.msra.mxu0 %v172
    %346 = vmatpush.msra.mxu0 %v171
    %347 = vmatpush.msra.mxu0 %v170
    %348 = vmatpush.msra.mxu0 %v169
    %349 = vmatpush.msra.mxu0 %v168
    %350 = vmatpush.msra.mxu0 %v167
    %351 = vmatpush.msra.mxu0 %v166
    %352 = vmatpush.msra.mxu0 %v165
    %353 = vmatmul.f32.gmra.mxu0 %v336
    %v354 = vpop.f32.mrf.mxu0
    %v355 = vadd.f32 %v215, %v354
    %356 = vdwg.mxu0
    %v357 = vmul.f32 %v355, %v147
    %s358 = sld [smem:[#allocation14 + $0x2]]
    %v359 = vstv %s358
    %v360 = vmul.f32 %v359, %v304
    %s361 = sld [smem:[#allocation15 + $0x2]]
    %v362 = vstv %s361
    %v363 = vmul.f32 %v362, %v357
    %v364 = vadd.f32 %v360, %v363
    %v365 = vld [vmem:[#allocation9 + $0x3] sm:$0x1]
    %366 = vmatpush.msra.mxu0 %v164
    %367 = vmatpush.msra.mxu0 %v163
    %368 = vmatpush.msra.mxu0 %v162
    %369 = vmatpush.msra.mxu0 %v161
    %370 = vmatpush.msra.mxu0 %v160
    %371 = vmatpush.msra.mxu0 %v159
    %372 = vmatpush.msra.mxu0 %v158
    %373 = vmatpush.msra.mxu0 %v157
    %374 = vmatpush.msra.mxu0 %v156
    %375 = vmatpush.msra.mxu0 %v155
    %376 = vmatpush.msra.mxu0 %v154
    %377 = vmatpush.msra.mxu0 %v153
    %378 = vmatpush.msra.mxu0 %v152
    %379 = vmatpush.msra.mxu0 %v151
    %380 = vmatpush.msra.mxu0 %v150
    %381 = vmatpush.msra.mxu0 %v149
    %382 = vmatmul.f32.gmra.mxu0 %v364
    %v383 = vpop.f32.mrf.mxu0
    %v384 = vadd.f32 %v148, %v383
    %385 = vdwg.mxu0
    %v386 = vperm.slane %v365, 0
    %v387 = vadd.f32 %v384, %v386
    %v388 = vmul.f32 %v387, %v387
    %v389 = vmul.f32 %v387, %v388
    %v390 = vmul.f32 %v389, 0.044715
    %v391 = vadd.f32 %v387, %v390
    %v392 = vmul.f32 %v391, 0.7978846
    %v393 = vtanh.pop %v392
    %v394 = vadd.f32 %v393, 1.0
    %v395 = vmul.f32 %v394, 0.5
    %v396 = vmul.f32 %v387, %v395
    %397 = vmatpush.msra.mxu0 %v180
    %398 = vmatpush.msra.mxu0 %v179
    %399 = vmatpush.msra.mxu0 %v178
    %400 = vmatpush.msra.mxu0 %v177
    %401 = vmatpush.msra.mxu0 %v176
    %402 = vmatpush.msra.mxu0 %v175
    %403 = vmatpush.msra.mxu0 %v174
    %404 = vmatpush.msra.mxu0 %v173
    %405 = vmatpush.msra.mxu0 %v172
    %406 = vmatpush.msra.mxu0 %v171
    %407 = vmatpush.msra.mxu0 %v170
    %408 = vmatpush.msra.mxu0 %v169
    %409 = vmatpush.msra.mxu0 %v168
    %410 = vmatpush.msra.mxu0 %v167
    %411 = vmatpush.msra.mxu0 %v166
    %412 = vmatpush.msra.mxu0 %v165
    %413 = vmatmul.f32.gmra.mxu0 %v396
    %v414 = vpop.f32.mrf.mxu0
    %v415 = vadd.f32 %v215, %v414
    %416 = vdwg.mxu0
    %v417 = vmul.f32 %v415, %v147
    %s418 = sld [smem:[#allocation14 + $0x3]]
    %v419 = vstv %s418
    %v420 = vmul.f32 %v419, %v364
    %s421 = sld [smem:[#allocation15 + $0x3]]
    %v422 = vstv %s421
    %v423 = vmul.f32 %v422, %v417
    %v424 = vadd.f32 %v420, %v423
    %v425 = vld [vmem:[#allocation9 + $0x4] sm:$0x1]
    %426 = vmatpush.msra.mxu0 %v164
    %427 = vmatpush.msra.mxu0 %v163
    %428 = vmatpush.msra.mxu0 %v162
    %429 = vmatpush.msra.mxu0 %v161
    %430 = vmatpush.msra.mxu0 %v160
    %431 = vmatpush.msra.mxu0 %v159
    %432 = vmatpush.msra.mxu0 %v158
    %433 = vmatpush.msra.mxu0 %v157
    %434 = vmatpush.msra.mxu0 %v156
    %435 = vmatpush.msra.mxu0 %v155
    %436 = vmatpush.msra.mxu0 %v154
    %437 = vmatpush.msra.mxu0 %v153
    %438 = vmatpush.msra.mxu0 %v152
    %439 = vmatpush.msra.mxu0 %v151
    %440 = vmatpush.msra.mxu0 %v150
    %441 = vmatpush.msra.mxu0 %v149
    %442 = vmatmul.f32.gmra.mxu0 %v424
    %v443 = vpop.f32.mrf.mxu0
    %v444 = vadd.f32 %v148, %v443
    %445 = vdwg.mxu0
    %v446 = vperm.slane %v425, 0
    %v447 = vadd.f32 %v444, %v446
    %v448 = vmul.f32 %v447, %v447
    %v449 = vmul.f32 %v447, %v448
    %v450 = vmul.f32 %v449, 0.044715
    %v451 = vadd.f32 %v447, %v450
    %v452 = vmul.f32 %v451, 0.7978846
    %v453 = vtanh.pop %v452
    %v454 = vadd.f32 %v453, 1.0
    %v455 = vmul.f32 %v454, 0.5
    %v456 = vmul.f32 %v447, %v455
    %457 = vmatpush.msra.mxu0 %v180
    %458 = vmatpush.msra.mxu0 %v179
    %459 = vmatpush.msra.mxu0 %v178
    %460 = vmatpush.msra.mxu0 %v177
    %461 = vmatpush.msra.mxu0 %v176
    %462 = vmatpush.msra.mxu0 %v175
    %463 = vmatpush.msra.mxu0 %v174
    %464 = vmatpush.msra.mxu0 %v173
    %465 = vmatpush.msra.mxu0 %v172
    %466 = vmatpush.msra.mxu0 %v171
    %467 = vmatpush.msra.mxu0 %v170
    %468 = vmatpush.msra.mxu0 %v169
    %469 = vmatpush.msra.mxu0 %v168
    %470 = vmatpush.msra.mxu0 %v167
    %471 = vmatpush.msra.mxu0 %v166
    %472 = vmatpush.msra.mxu0 %v165
    %473 = vmatmul.f32.gmra.mxu0 %v456
    %v474 = vpop.f32.mrf.mxu0
    %v475 = vadd.f32 %v215, %v474
    %476 = vdwg.mxu0
    %v477 = vmul.f32 %v475, %v147
    %s478 = sld [smem:[#allocation14 + $0x4]]
    %v479 = vstv %s478
    %v480 = vmul.f32 %v479, %v424
    %s481 = sld [smem:[#allocation15 + $0x4]]
    %v482 = vstv %s481
    %v483 = vmul.f32 %v482, %v477
    %v484 = vadd.f32 %v480, %v483
    %v485 = vld [vmem:[#allocation9 + $0x5] sm:$0x1]
    %486 = vmatpush.msra.mxu0 %v164
    %487 = vmatpush.msra.mxu0 %v163
    %488 = vmatpush.msra.mxu0 %v162
    %489 = vmatpush.msra.mxu0 %v161
    %490 = vmatpush.msra.mxu0 %v160
    %491 = vmatpush.msra.mxu0 %v159
    %492 = vmatpush.msra.mxu0 %v158
    %493 = vmatpush.msra.mxu0 %v157
    %494 = vmatpush.msra.mxu0 %v156
    %495 = vmatpush.msra.mxu0 %v155
    %496 = vmatpush.msra.mxu0 %v154
    %497 = vmatpush.msra.mxu0 %v153
    %498 = vmatpush.msra.mxu0 %v152
    %499 = vmatpush.msra.mxu0 %v151
    %500 = vmatpush.msra.mxu0 %v150
    %501 = vmatpush.msra.mxu0 %v149
    %502 = vmatmul.f32.gmra.mxu0 %v484
    %v503 = vpop.f32.mrf.mxu0
    %v504 = vadd.f32 %v148, %v503
    %505 = vdwg.mxu0
    %v506 = vperm.slane %v485, 0
    %v507 = vadd.f32 %v504, %v506
    %v508 = vmul.f32 %v507, %v507
    %v509 = vmul.f32 %v507, %v508
    %v510 = vmul.f32 %v509, 0.044715
    %v511 = vadd.f32 %v507, %v510
    %v512 = vmul.f32 %v511, 0.7978846
    %v513 = vtanh.pop %v512
    %v514 = vadd.f32 %v513, 1.0
    %v515 = vmul.f32 %v514, 0.5
    %v516 = vmul.f32 %v507, %v515
    %517 = vmatpush.msra.mxu0 %v180
    %518 = vmatpush.msra.mxu0 %v179
    %519 = vmatpush.msra.mxu0 %v178
    %520 = vmatpush.msra.mxu0 %v177
    %521 = vmatpush.msra.mxu0 %v176
    %522 = vmatpush.msra.mxu0 %v175
    %523 = vmatpush.msra.mxu0 %v174
    %524 = vmatpush.msra.mxu0 %v173
    %525 = vmatpush.msra.mxu0 %v172
    %526 = vmatpush.msra.mxu0 %v171
    %527 = vmatpush.msra.mxu0 %v170
    %528 = vmatpush.msra.mxu0 %v169
    %529 = vmatpush.msra.mxu0 %v168
    %530 = vmatpush.msra.mxu0 %v167
    %531 = vmatpush.msra.mxu0 %v166
    %532 = vmatpush.msra.mxu0 %v165
    %533 = vmatmul.f32.gmra.mxu0 %v516
    %v534 = vpop.f32.mrf.mxu0
    %v535 = vadd.f32 %v215, %v534
    %536 = vdwg.mxu0
    %v537 = vmul.f32 %v535, %v147
    %s538 = sld [smem:[#allocation14 + $0x5]]
    %v539 = vstv %s538
    %v540 = vmul.f32 %v539, %v484
    %s541 = sld [smem:[#allocation15 + $0x5]]
    %v542 = vstv %s541
    %v543 = vmul.f32 %v542, %v537
    %v544 = vadd.f32 %v540, %v543
    %v545 = vld [vmem:[#allocation9 + $0x6] sm:$0x1]
    %546 = vmatpush.msra.mxu0 %v164
    %547 = vmatpush.msra.mxu0 %v163
    %548 = vmatpush.msra.mxu0 %v162
    %549 = vmatpush.msra.mxu0 %v161
    %550 = vmatpush.msra.mxu0 %v160
    %551 = vmatpush.msra.mxu0 %v159
    %552 = vmatpush.msra.mxu0 %v158
    %553 = vmatpush.msra.mxu0 %v157
    %554 = vmatpush.msra.mxu0 %v156
    %555 = vmatpush.msra.mxu0 %v155
    %556 = vmatpush.msra.mxu0 %v154
    %557 = vmatpush.msra.mxu0 %v153
    %558 = vmatpush.msra.mxu0 %v152
    %559 = vmatpush.msra.mxu0 %v151
    %560 = vmatpush.msra.mxu0 %v150
    %561 = vmatpush.msra.mxu0 %v149
    %562 = vmatmul.f32.gmra.mxu0 %v544
    %v563 = vpop.f32.mrf.mxu0
    %v564 = vadd.f32 %v148, %v563
    %565 = vdwg.mxu0
    %v566 = vperm.slane %v545, 0
    %v567 = vadd.f32 %v564, %v566
    %v568 = vmul.f32 %v567, %v567
    %v569 = vmul.f32 %v567, %v568
    %v570 = vmul.f32 %v569, 0.044715
    %v571 = vadd.f32 %v567, %v570
    %v572 = vmul.f32 %v571, 0.7978846
    %v573 = vtanh.pop %v572
    %v574 = vadd.f32 %v573, 1.0
    %v575 = vmul.f32 %v574, 0.5
    %v576 = vmul.f32 %v567, %v575
    %577 = vmatpush.msra.mxu0 %v180
    %578 = vmatpush.msra.mxu0 %v179
    %579 = vmatpush.msra.mxu0 %v178
    %580 = vmatpush.msra.mxu0 %v177
    %581 = vmatpush.msra.mxu0 %v176
    %582 = vmatpush.msra.mxu0 %v175
    %583 = vmatpush.msra.mxu0 %v174
    %584 = vmatpush.msra.mxu0 %v173
    %585 = vmatpush.msra.mxu0 %v172
    %586 = vmatpush.msra.mxu0 %v171
    %587 = vmatpush.msra.mxu0 %v170
    %588 = vmatpush.msra.mxu0 %v169
    %589 = vmatpush.msra.mxu0 %v168
    %590 = vmatpush.msra.mxu0 %v167
    %591 = vmatpush.msra.mxu0 %v166
    %592 = vmatpush.msra.mxu0 %v165
    %593 = vmatmul.f32.gmra.mxu0 %v576
    %v594 = vpop.f32.mrf.mxu0
    %v595 = vadd.f32 %v215, %v594
    %596 = vdwg.mxu0
    %v597 = vmul.f32 %v595, %v147
    %s598 = sld [smem:[#allocation14 + $0x6]]
    %v599 = vstv %s598
    %v600 = vmul.f32 %v599, %v544
    %s601 = sld [smem:[#allocation15 + $0x6]]
    %v602 = vstv %s601
    %v603 = vmul.f32 %v602, %v597
    %v604 = vadd.f32 %v600, %v603
    %v605 = vld [vmem:[#allocation9 + $0x7] sm:$0x1]
    %606 = vmatpush.msra.mxu0 %v164
    %607 = vmatpush.msra.mxu0 %v163
    %608 = vmatpush.msra.mxu0 %v162
    %609 = vmatpush.msra.mxu0 %v161
    %610 = vmatpush.msra.mxu0 %v160
    %611 = vmatpush.msra.mxu0 %v159
    %612 = vmatpush.msra.mxu0 %v158
    %613 = vmatpush.msra.mxu0 %v157
    %614 = vmatpush.msra.mxu0 %v156
    %615 = vmatpush.msra.mxu0 %v155
    %616 = vmatpush.msra.mxu0 %v154
    %617 = vmatpush.msra.mxu0 %v153
    %618 = vmatpush.msra.mxu0 %v152
    %619 = vmatpush.msra.mxu0 %v151
    %620 = vmatpush.msra.mxu0 %v150
    %621 = vmatpush.msra.mxu0 %v149
    %622 = vmatmul.f32.gmra.mxu0 %v604
    %v623 = vpop.f32.mrf.mxu0
    %v624 = vadd.f32 %v148, %v623
    %625 = vdwg.mxu0
    %v626 = vperm.slane %v605, 0
    %v627 = vadd.f32 %v624, %v626
    %v628 = vmul.f32 %v627, %v627
    %v629 = vmul.f32 %v627, %v628
    %v630 = vmul.f32 %v629, 0.044715
    %v631 = vadd.f32 %v627, %v630
    %v632 = vmul.f32 %v631, 0.7978846
    %v633 = vtanh.pop %v632
    %v634 = vadd.f32 %v633, 1.0
    %v635 = vmul.f32 %v634, 0.5
    %v636 = vmul.f32 %v627, %v635
    %637 = vmatpush.msra.mxu0 %v180
    %638 = vmatpush.msra.mxu0 %v179
    %639 = vmatpush.msra.mxu0 %v178
    %640 = vmatpush.msra.mxu0 %v177
    %641 = vmatpush.msra.mxu0 %v176
    %642 = vmatpush.msra.mxu0 %v175
    %643 = vmatpush.msra.mxu0 %v174
    %644 = vmatpush.msra.mxu0 %v173
    %645 = vmatpush.msra.mxu0 %v172
    %646 = vmatpush.msra.mxu0 %v171
    %647 = vmatpush.msra.mxu0 %v170
    %648 = vmatpush.msra.mxu0 %v169
    %649 = vmatpush.msra.mxu0 %v168
    %650 = vmatpush.msra.mxu0 %v167
    %651 = vmatpush.msra.mxu0 %v166
    %652 = vmatpush.msra.mxu0 %v165
    %653 = vmatmul.f32.gmra.mxu0 %v636
    %v654 = vpop.f32.mrf.mxu0
    %v655 = vadd.f32 %v215, %v654
    %656 = vdwg.mxu0
    %v657 = vmul.f32 %v655, %v147
    %s658 = sld [smem:[#allocation14 + $0x7]]
    %v659 = vstv %s658
    %v660 = vmul.f32 %v659, %v604
    %s661 = sld [smem:[#allocation15 + $0x7]]
    %v662 = vstv %s661
    %v663 = vmul.f32 %v662, %v657
    %v664 = vadd.f32 %v660, %v663
    %v665 = vld [vmem:[#allocation9 + $0x8] sm:$0x1]
    %666 = vmatpush.msra.mxu0 %v164
    %667 = vmatpush.msra.mxu0 %v163
    %668 = vmatpush.msra.mxu0 %v162
    %669 = vmatpush.msra.mxu0 %v161
    %670 = vmatpush.msra.mxu0 %v160
    %671 = vmatpush.msra.mxu0 %v159
    %672 = vmatpush.msra.mxu0 %v158
    %673 = vmatpush.msra.mxu0 %v157
    %674 = vmatpush.msra.mxu0 %v156
    %675 = vmatpush.msra.mxu0 %v155
    %676 = vmatpush.msra.mxu0 %v154
    %677 = vmatpush.msra.mxu0 %v153
    %678 = vmatpush.msra.mxu0 %v152
    %679 = vmatpush.msra.mxu0 %v151
    %680 = vmatpush.msra.mxu0 %v150
    %681 = vmatpush.msra.mxu0 %v149
    %682 = vmatmul.f32.gmra.mxu0 %v664
    %v683 = vpop.f32.mrf.mxu0
    %v684 = vadd.f32 %v148, %v683
    %685 = vdwg.mxu0
    %v686 = vperm.slane %v665, 0
    %v687 = vadd.f32 %v684, %v686
    %v688 = vmul.f32 %v687, %v687
    %v689 = vmul.f32 %v687, %v688
    %v690 = vmul.f32 %v689, 0.044715
    %v691 = vadd.f32 %v687, %v690
    %v692 = vmul.f32 %v691, 0.7978846
    %v693 = vtanh.pop %v692
    %v694 = vadd.f32 %v693, 1.0
    %v695 = vmul.f32 %v694, 0.5
    %v696 = vmul.f32 %v687, %v695
    %697 = vmatpush.msra.mxu0 %v180
    %698 = vmatpush.msra.mxu0 %v179
    %699 = vmatpush.msra.mxu0 %v178
    %700 = vmatpush.msra.mxu0 %v177
    %701 = vmatpush.msra.mxu0 %v176
    %702 = vmatpush.msra.mxu0 %v175
    %703 = vmatpush.msra.mxu0 %v174
    %704 = vmatpush.msra.mxu0 %v173
    %705 = vmatpush.msra.mxu0 %v172
    %706 = vmatpush.msra.mxu0 %v171
    %707 = vmatpush.msra.mxu0 %v170
    %708 = vmatpush.msra.mxu0 %v169
    %709 = vmatpush.msra.mxu0 %v168
    %710 = vmatpush.msra.mxu0 %v167
    %711 = vmatpush.msra.mxu0 %v166
    %712 = vmatpush.msra.mxu0 %v165
    %713 = vmatmul.f32.gmra.mxu0 %v696
    %v714 = vpop.f32.mrf.mxu0
    %v715 = vadd.f32 %v215, %v714
    %716 = vdwg.mxu0
    %v717 = vmul.f32 %v715, %v147
    %s718 = sld [smem:[#allocation14 + $0x8]]
    %v719 = vstv %s718
    %v720 = vmul.f32 %v719, %v664
    %s721 = sld [smem:[#allocation15 + $0x8]]
    %v722 = vstv %s721
    %v723 = vmul.f32 %v722, %v717
    %v724 = vadd.f32 %v720, %v723
    %v725 = vld [vmem:[#allocation9 + $0x9] sm:$0x1]
    %726 = vmatpush.msra.mxu0 %v164
    %727 = vmatpush.msra.mxu0 %v163
    %728 = vmatpush.msra.mxu0 %v162
    %729 = vmatpush.msra.mxu0 %v161
    %730 = vmatpush.msra.mxu0 %v160
    %731 = vmatpush.msra.mxu0 %v159
    %732 = vmatpush.msra.mxu0 %v158
    %733 = vmatpush.msra.mxu0 %v157
    %734 = vmatpush.msra.mxu0 %v156
    %735 = vmatpush.msra.mxu0 %v155
    %736 = vmatpush.msra.mxu0 %v154
    %737 = vmatpush.msra.mxu0 %v153
    %738 = vmatpush.msra.mxu0 %v152
    %739 = vmatpush.msra.mxu0 %v151
    %740 = vmatpush.msra.mxu0 %v150
    %741 = vmatpush.msra.mxu0 %v149
    %742 = vmatmul.f32.gmra.mxu0 %v724
    %v743 = vpop.f32.mrf.mxu0
    %v744 = vadd.f32 %v148, %v743
    %745 = vdwg.mxu0
    %v746 = vperm.slane %v725, 0
    %v747 = vadd.f32 %v744, %v746
    %v748 = vmul.f32 %v747, %v747
    %v749 = vmul.f32 %v747, %v748
    %v750 = vmul.f32 %v749, 0.044715
    %v751 = vadd.f32 %v747, %v750
    %v752 = vmul.f32 %v751, 0.7978846
    %v753 = vtanh.pop %v752
    %v754 = vadd.f32 %v753, 1.0
    %v755 = vmul.f32 %v754, 0.5
    %v756 = vmul.f32 %v747, %v755
    %757 = vmatpush.msra.mxu0 %v180
    %758 = vmatpush.msra.mxu0 %v179
    %759 = vmatpush.msra.mxu0 %v178
    %760 = vmatpush.msra.mxu0 %v177
    %761 = vmatpush.msra.mxu0 %v176
    %762 = vmatpush.msra.mxu0 %v175
    %763 = vmatpush.msra.mxu0 %v174
    %764 = vmatpush.msra.mxu0 %v173
    %765 = vmatpush.msra.mxu0 %v172
    %766 = vmatpush.msra.mxu0 %v171
    %767 = vmatpush.msra.mxu0 %v170
    %768 = vmatpush.msra.mxu0 %v169
    %769 = vmatpush.msra.mxu0 %v168
    %770 = vmatpush.msra.mxu0 %v167
    %771 = vmatpush.msra.mxu0 %v166
    %772 = vmatpush.msra.mxu0 %v165
    %773 = vmatmul.f32.gmra.mxu0 %v756
    %v774 = vpop.f32.mrf.mxu0
    %v775 = vadd.f32 %v215, %v774
    %776 = vdwg.mxu0
    %v777 = vmul.f32 %v775, %v147
    %s778 = sld [smem:[#allocation14 + $0x9]]
    %v779 = vstv %s778
    %v780 = vmul.f32 %v779, %v724
    %s781 = sld [smem:[#allocation15 + $0x9]]
    %v782 = vstv %s781
    %v783 = vmul.f32 %v782, %v777
    %v784 = vadd.f32 %v780, %v783
    %v785 = vld [vmem:[#allocation9 + $0xa] sm:$0x1]
    %786 = vmatpush.msra.mxu0 %v164
    %787 = vmatpush.msra.mxu0 %v163
    %788 = vmatpush.msra.mxu0 %v162
    %789 = vmatpush.msra.mxu0 %v161
    %790 = vmatpush.msra.mxu0 %v160
    %791 = vmatpush.msra.mxu0 %v159
    %792 = vmatpush.msra.mxu0 %v158
    %793 = vmatpush.msra.mxu0 %v157
    %794 = vmatpush.msra.mxu0 %v156
    %795 = vmatpush.msra.mxu0 %v155
    %796 = vmatpush.msra.mxu0 %v154
    %797 = vmatpush.msra.mxu0 %v153
    %798 = vmatpush.msra.mxu0 %v152
    %799 = vmatpush.msra.mxu0 %v151
    %800 = vmatpush.msra.mxu0 %v150
    %801 = vmatpush.msra.mxu0 %v149
    %802 = vmatmul.f32.gmra.mxu0 %v784
    %v803 = vpop.f32.mrf.mxu0
    %v804 = vadd.f32 %v148, %v803
    %805 = vdwg.mxu0
    %v806 = vperm.slane %v785, 0
    %v807 = vadd.f32 %v804, %v806
    %v808 = vmul.f32 %v807, %v807
    %v809 = vmul.f32 %v807, %v808
    %v810 = vmul.f32 %v809, 0.044715
    %v811 = vadd.f32 %v807, %v810
    %v812 = vmul.f32 %v811, 0.7978846
    %v813 = vtanh.pop %v812
    %v814 = vadd.f32 %v813, 1.0
    %v815 = vmul.f32 %v814, 0.5
    %v816 = vmul.f32 %v807, %v815
    %817 = vmatpush.msra.mxu0 %v180
    %818 = vmatpush.msra.mxu0 %v179
    %819 = vmatpush.msra.mxu0 %v178
    %820 = vmatpush.msra.mxu0 %v177
    %821 = vmatpush.msra.mxu0 %v176
    %822 = vmatpush.msra.mxu0 %v175
    %823 = vmatpush.msra.mxu0 %v174
    %824 = vmatpush.msra.mxu0 %v173
    %825 = vmatpush.msra.mxu0 %v172
    %826 = vmatpush.msra.mxu0 %v171
    %827 = vmatpush.msra.mxu0 %v170
    %828 = vmatpush.msra.mxu0 %v169
    %829 = vmatpush.msra.mxu0 %v168
    %830 = vmatpush.msra.mxu0 %v167
    %831 = vmatpush.msra.mxu0 %v166
    %832 = vmatpush.msra.mxu0 %v165
    %833 = vmatmul.f32.gmra.mxu0 %v816
    %v834 = vpop.f32.mrf.mxu0
    %v835 = vadd.f32 %v215, %v834
    %836 = vdwg.mxu0
    %v837 = vmul.f32 %v835, %v147
    %s838 = sld [smem:[#allocation14 + $0xa]]
    %v839 = vstv %s838
    %v840 = vmul.f32 %v839, %v784
    %s841 = sld [smem:[#allocation15 + $0xa]]
    %v842 = vstv %s841
    %v843 = vmul.f32 %v842, %v837
    %v844 = vadd.f32 %v840, %v843
    %v845 = vld [vmem:[#allocation9 + $0xb] sm:$0x1]
    %846 = vmatpush.msra.mxu0 %v164
    %847 = vmatpush.msra.mxu0 %v163
    %848 = vmatpush.msra.mxu0 %v162
    %849 = vmatpush.msra.mxu0 %v161
    %850 = vmatpush.msra.mxu0 %v160
    %851 = vmatpush.msra.mxu0 %v159
    %852 = vmatpush.msra.mxu0 %v158
    %853 = vmatpush.msra.mxu0 %v157
    %854 = vmatpush.msra.mxu0 %v156
    %855 = vmatpush.msra.mxu0 %v155
    %856 = vmatpush.msra.mxu0 %v154
    %857 = vmatpush.msra.mxu0 %v153
    %858 = vmatpush.msra.mxu0 %v152
    %859 = vmatpush.msra.mxu0 %v151
    %860 = vmatpush.msra.mxu0 %v150
    %861 = vmatpush.msra.mxu0 %v149
    %862 = vmatmul.f32.gmra.mxu0 %v844
    %v863 = vpop.f32.mrf.mxu0
    %v864 = vadd.f32 %v148, %v863
    %865 = vdwg.mxu0
    %v866 = vperm.slane %v845, 0
    %v867 = vadd.f32 %v864, %v866
    %v868 = vmul.f32 %v867, %v867
    %v869 = vmul.f32 %v867, %v868
    %v870 = vmul.f32 %v869, 0.044715
    %v871 = vadd.f32 %v867, %v870
    %v872 = vmul.f32 %v871, 0.7978846
    %v873 = vtanh.pop %v872
    %v874 = vadd.f32 %v873, 1.0
    %v875 = vmul.f32 %v874, 0.5
    %v876 = vmul.f32 %v867, %v875
    %877 = vmatpush.msra.mxu0 %v180
    %878 = vmatpush.msra.mxu0 %v179
    %879 = vmatpush.msra.mxu0 %v178
    %880 = vmatpush.msra.mxu0 %v177
    %881 = vmatpush.msra.mxu0 %v176
    %882 = vmatpush.msra.mxu0 %v175
    %883 = vmatpush.msra.mxu0 %v174
    %884 = vmatpush.msra.mxu0 %v173
    %885 = vmatpush.msra.mxu0 %v172
    %886 = vmatpush.msra.mxu0 %v171
    %887 = vmatpush.msra.mxu0 %v170
    %888 = vmatpush.msra.mxu0 %v169
    %889 = vmatpush.msra.mxu0 %v168
    %890 = vmatpush.msra.mxu0 %v167
    %891 = vmatpush.msra.mxu0 %v166
    %892 = vmatpush.msra.mxu0 %v165
    %893 = vmatmul.f32.gmra.mxu0 %v876
    %v894 = vpop.f32.mrf.mxu0
    %v895 = vadd.f32 %v215, %v894
    %896 = vdwg.mxu0
    %v897 = vmul.f32 %v895, %v147
    %s898 = sld [smem:[#allocation14 + $0xb]]
    %v899 = vstv %s898
    %v900 = vmul.f32 %v899, %v844
    %s901 = sld [smem:[#allocation15 + $0xb]]
    %v902 = vstv %s901
    %v903 = vmul.f32 %v902, %v897
    %v904 = vadd.f32 %v900, %v903
    %v905 = vld [vmem:[#allocation9 + $0xc] sm:$0x1]
    %906 = vmatpush.msra.mxu0 %v164
    %907 = vmatpush.msra.mxu0 %v163
    %908 = vmatpush.msra.mxu0 %v162
    %909 = vmatpush.msra.mxu0 %v161
    %910 = vmatpush.msra.mxu0 %v160
    %911 = vmatpush.msra.mxu0 %v159
    %912 = vmatpush.msra.mxu0 %v158
    %913 = vmatpush.msra.mxu0 %v157
    %914 = vmatpush.msra.mxu0 %v156
    %915 = vmatpush.msra.mxu0 %v155
    %916 = vmatpush.msra.mxu0 %v154
    %917 = vmatpush.msra.mxu0 %v153
    %918 = vmatpush.msra.mxu0 %v152
    %919 = vmatpush.msra.mxu0 %v151
    %920 = vmatpush.msra.mxu0 %v150
    %921 = vmatpush.msra.mxu0 %v149
    %922 = vmatmul.f32.gmra.mxu0 %v904
    %v923 = vpop.f32.mrf.mxu0
    %v924 = vadd.f32 %v148, %v923
    %925 = vdwg.mxu0
    %v926 = vperm.slane %v905, 0
    %v927 = vadd.f32 %v924, %v926
    %v928 = vmul.f32 %v927, %v927
    %v929 = vmul.f32 %v927, %v928
    %v930 = vmul.f32 %v929, 0.044715
    %v931 = vadd.f32 %v927, %v930
    %v932 = vmul.f32 %v931, 0.7978846
    %v933 = vtanh.pop %v932
    %v934 = vadd.f32 %v933, 1.0
    %v935 = vmul.f32 %v934, 0.5
    %v936 = vmul.f32 %v927, %v935
    %937 = vmatpush.msra.mxu0 %v180
    %938 = vmatpush.msra.mxu0 %v179
    %939 = vmatpush.msra.mxu0 %v178
    %940 = vmatpush.msra.mxu0 %v177
    %941 = vmatpush.msra.mxu0 %v176
    %942 = vmatpush.msra.mxu0 %v175
    %943 = vmatpush.msra.mxu0 %v174
    %944 = vmatpush.msra.mxu0 %v173
    %945 = vmatpush.msra.mxu0 %v172
    %946 = vmatpush.msra.mxu0 %v171
    %947 = vmatpush.msra.mxu0 %v170
    %948 = vmatpush.msra.mxu0 %v169
    %949 = vmatpush.msra.mxu0 %v168
    %950 = vmatpush.msra.mxu0 %v167
    %951 = vmatpush.msra.mxu0 %v166
    %952 = vmatpush.msra.mxu0 %v165
    %953 = vmatmul.f32.gmra.mxu0 %v936
    %v954 = vpop.f32.mrf.mxu0
    %v955 = vadd.f32 %v215, %v954
    %956 = vdwg.mxu0
    %v957 = vmul.f32 %v955, %v147
    %s958 = sld [smem:[#allocation14 + $0xc]]
    %v959 = vstv %s958
    %v960 = vmul.f32 %v959, %v904
    %s961 = sld [smem:[#allocation15 + $0xc]]
    %v962 = vstv %s961
    %v963 = vmul.f32 %v962, %v957
    %v964 = vadd.f32 %v960, %v963
    %v965 = vld [vmem:[#allocation9 + $0xd] sm:$0x1]
    %966 = vmatpush.msra.mxu0 %v164
    %967 = vmatpush.msra.mxu0 %v163
    %968 = vmatpush.msra.mxu0 %v162
    %969 = vmatpush.msra.mxu0 %v161
    %970 = vmatpush.msra.mxu0 %v160
    %971 = vmatpush.msra.mxu0 %v159
    %972 = vmatpush.msra.mxu0 %v158
    %973 = vmatpush.msra.mxu0 %v157
    %974 = vmatpush.msra.mxu0 %v156
    %975 = vmatpush.msra.mxu0 %v155
    %976 = vmatpush.msra.mxu0 %v154
    %977 = vmatpush.msra.mxu0 %v153
    %978 = vmatpush.msra.mxu0 %v152
    %979 = vmatpush.msra.mxu0 %v151
    %980 = vmatpush.msra.mxu0 %v150
    %981 = vmatpush.msra.mxu0 %v149
    %982 = vmatmul.f32.gmra.mxu0 %v964
    %v983 = vpop.f32.mrf.mxu0
    %v984 = vadd.f32 %v148, %v983
    %985 = vdwg.mxu0
    %v986 = vperm.slane %v965, 0
    %v987 = vadd.f32 %v984, %v986
    %v988 = vmul.f32 %v987, %v987
    %v989 = vmul.f32 %v987, %v988
    %v990 = vmul.f32 %v989, 0.044715
    %v991 = vadd.f32 %v987, %v990
    %v992 = vmul.f32 %v991, 0.7978846
    %v993 = vtanh.pop %v992
    %v994 = vadd.f32 %v993, 1.0
    %v995 = vmul.f32 %v994, 0.5
    %v996 = vmul.f32 %v987, %v995
    %997 = vmatpush.msra.mxu0 %v180
    %998 = vmatpush.msra.mxu0 %v179
    %999 = vmatpush.msra.mxu0 %v178
    %1000 = vmatpush.msra.mxu0 %v177
    %1001 = vmatpush.msra.mxu0 %v176
    %1002 = vmatpush.msra.mxu0 %v175
    %1003 = vmatpush.msra.mxu0 %v174
    %1004 = vmatpush.msra.mxu0 %v173
    %1005 = vmatpush.msra.mxu0 %v172
    %1006 = vmatpush.msra.mxu0 %v171
    %1007 = vmatpush.msra.mxu0 %v170
    %1008 = vmatpush.msra.mxu0 %v169
    %1009 = vmatpush.msra.mxu0 %v168
    %1010 = vmatpush.msra.mxu0 %v167
    %1011 = vmatpush.msra.mxu0 %v166
    %1012 = vmatpush.msra.mxu0 %v165
    %1013 = vmatmul.f32.gmra.mxu0 %v996
    %v1014 = vpop.f32.mrf.mxu0
    %v1015 = vadd.f32 %v215, %v1014
    %1016 = vdwg.mxu0
    %v1017 = vmul.f32 %v1015, %v147
    %s1018 = sld [smem:[#allocation14 + $0xd]]
    %v1019 = vstv %s1018
    %v1020 = vmul.f32 %v1019, %v964
    %s1021 = sld [smem:[#allocation15 + $0xd]]
    %v1022 = vstv %s1021
    %v1023 = vmul.f32 %v1022, %v1017
    %v1024 = vadd.f32 %v1020, %v1023
    %1025 = vst [vmem:[#allocation17] sm:$0xff] %v1024
    // Predicated region
    $region70: #{tpu_custom_call.1} parent=1 // pred_check
      _
    $region71: #{tpu_custom_call.1} parent=1 // pred_check_branch
      %1027 = sbr.rel (0) target = $region73
    $region72: #{tpu_custom_call.1} parent=1 // pred_region
      %1029 = vsyncadd [#allocation4], 0
      %s1031 = sshll.u32 [#allocation17], 4
      %s1032 = int_to_ptr.vmem [resolvable:$true] %s1031
      %s1033 = sshll.u32 %s9, 4
      %s1034 = int_to_ptr.hbm [resolvable:$true] %s1033
      %1036 = dma.vmem_to_hbm [thread:$0]  %s1032, 128, %s1034, [#allocation4]
    $region73: #{tpu_custom_call.1} parent=1 // pred_fallthru
      _
    // Predicated region
    $region74: #{tpu_custom_call.1} parent=1 // pred_check
      _
    $region75: #{tpu_custom_call.1} parent=1 // pred_check_branch
      %1038 = sbr.rel (0) target = $region77
    $region76: #{tpu_custom_call.1} parent=1 // pred_region
      %1040 = dma.done [#allocation4], 128
    $region77: #{tpu_custom_call.1} parent=1 // pred_fallthru
      _
    %1041 = vsyncpa [#allocation3], 1
    %1042 = vsyncpa [#allocation7], 1
    %1043 = vsyncpa [#allocation10], 1
    %1044 = vsyncpa [#allocation13], 1
    %1045 = vsyncpa [#allocation4], 1
    %1046 = vsyncpa [#allocation5], 1
    %1047 = vsyncpa [#allocation16], 1

</llo_original>
